<compile_context>
chip_gen: v6e
topology: v6e:2x2x1
jax: 0.10.0
libtpu: 0.0.40
codegen_flags: <defaults>
</compile_context>

<pallas_src>
import math
import functools

import jax
import jax.numpy as jnp
import numpy as np
from jax.experimental import pallas as pl
from jax.experimental.pallas import tpu as pltpu


def _mha_kernel(xq_ref, xk_ref, xv_ref,
                wq_ref, wk_ref, wv_ref, wh_ref,
                o_ref, *, num_heads, d_k):
    """One grid step == one block of `block_b` batch elements."""
    block_b, S, D = xq_ref.shape
    M = block_b * S
    scale = 1.0 / math.sqrt(d_k)

    # ---- fused Q/K/V projections over all rows of the batch block ---------
    # Weights arrive pre-transposed (in, out): y = x @ W_t, no in-kernel .T.
    xq = xq_ref[...].reshape(M, D)
    xk = xk_ref[...].reshape(M, D)
    xv = xv_ref[...].reshape(M, D)

    q = jnp.dot(xq, wq_ref[...], preferred_element_type=jnp.float32) * scale
    k = jnp.dot(xk, wk_ref[...], preferred_element_type=jnp.float32)
    v = jnp.dot(xv, wv_ref[...], preferred_element_type=jnp.float32)

    # ---- split_heads: stack heads on a leading group axis g = h*block_b + b
    def to_heads(z):
        return jnp.concatenate(
            [z[:, h * d_k:(h + 1) * d_k].reshape(block_b, S, d_k)
             for h in range(num_heads)],
            axis=0)                                    # (H*block_b, S, d_k)

    qh = to_heads(q)
    kh = to_heads(k)
    vh = to_heads(v)

    # ---- scaled-dot-product attention, batched over (head, batch) ---------
    scores = jnp.einsum('gqd,gkd->gqk', qh, kh,
                        preferred_element_type=jnp.float32)
    m = jnp.max(scores, axis=-1, keepdims=True)
    e = jnp.exp(scores - m)
    denom = jnp.sum(e, axis=-1, keepdims=True)
    p = e * (1.0 / denom)        # one reciprocal per row, not (S,S) divides

    attn = jnp.einsum('gqk,gkd->gqd', p, vh,
                      preferred_element_type=jnp.float32)  # (H*block_b,S,d_k)

    # ---- combine_heads: single lane-dense concat, then output projection --
    combined = jnp.concatenate(
        [attn[h * block_b:(h + 1) * block_b] for h in range(num_heads)],
        axis=-1)                                       # (block_b, S, D)

    out = jnp.dot(combined.reshape(M, D), wh_ref[...],
                  preferred_element_type=jnp.float32)
    o_ref[...] = out.reshape(block_b, S, D).astype(o_ref.dtype)


def multi_head_attention(x_q, x_k, x_v, w_q, w_k, w_v, w_h, *,
                         num_heads, block_b=None):
    """Forward of MultiHeadAttention(attention_type='default').

    Weights are given in PyTorch nn.Linear layout (out_features, in_features).
    """
    B, S, D = x_q.shape
    assert D % num_heads == 0, "d must be divisible by num_heads"
    d_k = D // num_heads

    if block_b is None:
        # Enough rows (block_b*S) per step to keep the MXU M-dim busy, but
        # keep >= 2 grid steps when B > 1 so both v7x TensorCores get work
        # (harmless on single-TC v5e/v6e).
        cap = B // 2 if B > 1 else 1
        block_b = max(1, min(cap, max(1, 256 // max(S, 1))))
    while B % block_b:          # full blocks only
        block_b -= 1
    grid_b = B // block_b

    # nn.Linear computes y = x @ W.T — pre-transpose ONCE here so the kernel
    # never materializes a transpose.
    wq_t = jnp.transpose(w_q)
    wk_t = jnp.transpose(w_k)
    wv_t = jnp.transpose(w_v)
    wh_t = jnp.transpose(w_h)

    kernel = functools.partial(_mha_kernel, num_heads=num_heads, d_k=d_k)

    act_spec = pl.BlockSpec((block_b, S, D), lambda b: (b, 0, 0))
    w_spec = pl.BlockSpec((D, D), lambda b: (0, 0))   # resident across grid

    return pl.pallas_call(
        kernel,
        out_shape=jax.ShapeDtypeStruct((B, S, D), x_q.dtype),
        grid_spec=pltpu.PrefetchScalarGridSpec(
            num_scalar_prefetch=0,
            grid=(grid_b,),
            in_specs=[act_spec, act_spec, act_spec,
                      w_spec, w_spec, w_spec, w_spec],
            out_specs=act_spec,
        ),
        compiler_params=pltpu.CompilerParams(
            dimension_semantics=("parallel",)),
    )(x_q, x_k, x_v, wq_t, wk_t, wv_t, wh_t)


def _reference(x_q, x_k, x_v, w_q, w_k, w_v, w_h, *, num_heads):
    """Pure-JAX reference mirroring the PyTorch forward."""
    B, S, D = x_q.shape
    d_k = D // num_heads

    def split(x):  # (B, S, D) -> (B, H, S, d_k)
        return x.reshape(B, S, num_heads, d_k).transpose(0, 2, 1, 3)

    Q = split(x_q @ w_q.T)
    K = split(x_k @ w_k.T)
    V = split(x_v @ w_v.T)
    scores = jnp.einsum("bhqd,bhkd->bhqk", Q, K) / math.sqrt(d_k)
    p = jax.nn.softmax(scores, axis=-1)
    attn = jnp.einsum("bhqk,bhkd->bhqd", p, V)
    combined = attn.transpose(0, 2, 1, 3).reshape(B, S, D)
    return combined @ w_h.T


if __name__ == "__main__":
    # Small shapes consistent with the module's forward.
    batch, seq_length, d, num_heads = 2, 8, 32, 4
    sigma_V = 1.0

    key = jax.random.PRNGKey(0)
    k_xq, k_xk, k_xv, k_wq, k_wk, k_wv = jax.random.split(key, 6)

    x_q = jax.random.normal(k_xq, (batch, seq_length, d), dtype=jnp.float32)
    x_k = jax.random.normal(k_xk, (batch, seq_length, d), dtype=jnp.float32)
    x_v = jax.random.normal(k_xv, (batch, seq_length, d), dtype=jnp.float32)

    # Deterministic parameter init (PyTorch nn.Linear weight layout: (out, in)).
    # distribution_Q / distribution_K = 'normal', distribution_V = 'normal',
    # distribution_H = 'identity'.
    w_q = jax.random.normal(k_wq, (d, d), dtype=jnp.float32)
    w_k = jax.random.normal(k_wk, (d, d), dtype=jnp.float32)
    w_v = sigma_V * jax.random.normal(k_wv, (d, d), dtype=jnp.float32)
    w_h = jnp.eye(d, dtype=jnp.float32)

    out = multi_head_attention(x_q, x_k, x_v, w_q, w_k, w_v, w_h,
                               num_heads=num_heads)
    out = jax.block_until_ready(out)

    ref = _reference(x_q, x_k, x_v, w_q, w_k, w_v, w_h, num_heads=num_heads)
    np.testing.assert_allclose(np.asarray(out), np.asarray(ref),
                               rtol=1e-4, atol=1e-4)
    print("KERNEL_OK")
</pallas_src>

<mosaic_0001>
module attributes {stable_mosaic.version = 11 : i64} {
  func.func @_mha_kernel(%arg0: i32, %arg1: memref<1x8x32xf32, #tpu.memory_space<vmem>>, %arg2: memref<1x8x32xf32, #tpu.memory_space<vmem>>, %arg3: memref<1x8x32xf32, #tpu.memory_space<vmem>>, %arg4: memref<32x32xf32, #tpu.memory_space<vmem>>, %arg5: memref<32x32xf32, #tpu.memory_space<vmem>>, %arg6: memref<32x32xf32, #tpu.memory_space<vmem>>, %arg7: memref<32x32xf32, #tpu.memory_space<vmem>>, %arg8: memref<1x8x32xf32, #tpu.memory_space<vmem>>) attributes {dimension_semantics = [#tpu.dimension_semantics<parallel>], iteration_bounds = array<i64: 2>, scalar_prefetch = 0 : i64, scratch_operands = 0 : i64, tpu.core_type = #tpu.core_type<tc>, window_params = [{transform_indices = @transform_0, window_bounds = array<i64: 1, 8, 32>}, {transform_indices = @transform_1, window_bounds = array<i64: 1, 8, 32>}, {transform_indices = @transform_2, window_bounds = array<i64: 1, 8, 32>}, {pipeline_mode = #tpu.pipeline_mode<synchronous>, transform_indices = @transform_3, window_bounds = array<i64: 32, 32>}, {pipeline_mode = #tpu.pipeline_mode<synchronous>, transform_indices = @transform_4, window_bounds = array<i64: 32, 32>}, {pipeline_mode = #tpu.pipeline_mode<synchronous>, transform_indices = @transform_5, window_bounds = array<i64: 32, 32>}, {pipeline_mode = #tpu.pipeline_mode<synchronous>, transform_indices = @transform_6, window_bounds = array<i64: 32, 32>}, {transform_indices = @transform_7, window_bounds = array<i64: 1, 8, 32>}]} {
    %c0 = arith.constant 0 : index
    %c0_0 = arith.constant 0 : index
    %c0_1 = arith.constant 0 : index
    %0 = vector.load %arg1[%c0, %c0_0, %c0_1] : memref<1x8x32xf32, #tpu.memory_space<vmem>>, vector<1x8x32xf32>
    %1 = vector.shape_cast %0 : vector<1x8x32xf32> to vector<8x32xf32>
    %c0_2 = arith.constant 0 : index
    %c0_3 = arith.constant 0 : index
    %c0_4 = arith.constant 0 : index
    %2 = vector.load %arg2[%c0_2, %c0_3, %c0_4] : memref<1x8x32xf32, #tpu.memory_space<vmem>>, vector<1x8x32xf32>
    %3 = vector.shape_cast %2 : vector<1x8x32xf32> to vector<8x32xf32>
    %c0_5 = arith.constant 0 : index
    %c0_6 = arith.constant 0 : index
    %c0_7 = arith.constant 0 : index
    %4 = vector.load %arg3[%c0_5, %c0_6, %c0_7] : memref<1x8x32xf32, #tpu.memory_space<vmem>>, vector<1x8x32xf32>
    %5 = vector.shape_cast %4 : vector<1x8x32xf32> to vector<8x32xf32>
    %c0_8 = arith.constant 0 : index
    %c0_9 = arith.constant 0 : index
    %6 = vector.load %arg4[%c0_8, %c0_9] : memref<32x32xf32, #tpu.memory_space<vmem>>, vector<32x32xf32>
    %cst = arith.constant dense<0.000000e+00> : vector<8x32xf32>
    %7 = tpu.matmul %1, %6, %cst {dimension_numbers = #tpu.dot_dimension_numbers<[1], [0], [0], [1], [0, 0, 1, 1], [], []>} : vector<8x32xf32>, vector<32x32xf32>, vector<8x32xf32> -> vector<8x32xf32>
    %cst_10 = arith.constant 0.353553385 : f32
    %8 = vector.broadcast %cst_10 : f32 to vector<8x32xf32>
    %9 = arith.mulf %7, %8 : vector<8x32xf32>
    %c0_11 = arith.constant 0 : index
    %c0_12 = arith.constant 0 : index
    %10 = vector.load %arg5[%c0_11, %c0_12] : memref<32x32xf32, #tpu.memory_space<vmem>>, vector<32x32xf32>
    %cst_13 = arith.constant dense<0.000000e+00> : vector<8x32xf32>
    %11 = tpu.matmul %3, %10, %cst_13 {dimension_numbers = #tpu.dot_dimension_numbers<[1], [0], [0], [1], [0, 0, 1, 1], [], []>} : vector<8x32xf32>, vector<32x32xf32>, vector<8x32xf32> -> vector<8x32xf32>
    %c0_14 = arith.constant 0 : index
    %c0_15 = arith.constant 0 : index
    %12 = vector.load %arg6[%c0_14, %c0_15] : memref<32x32xf32, #tpu.memory_space<vmem>>, vector<32x32xf32>
    %cst_16 = arith.constant dense<0.000000e+00> : vector<8x32xf32>
    %13 = tpu.matmul %5, %12, %cst_16 {dimension_numbers = #tpu.dot_dimension_numbers<[1], [0], [0], [1], [0, 0, 1, 1], [], []>} : vector<8x32xf32>, vector<32x32xf32>, vector<8x32xf32> -> vector<8x32xf32>
    %14 = vector.extract_strided_slice %9 {offsets = [0, 0], sizes = [8, 8], strides = [1, 1]} : vector<8x32xf32> to vector<8x8xf32>
    %15 = vector.shape_cast %14 : vector<8x8xf32> to vector<1x8x8xf32>
    %16 = vector.extract_strided_slice %9 {offsets = [0, 8], sizes = [8, 8], strides = [1, 1]} : vector<8x32xf32> to vector<8x8xf32>
    %17 = vector.shape_cast %16 : vector<8x8xf32> to vector<1x8x8xf32>
    %18 = vector.extract_strided_slice %9 {offsets = [0, 16], sizes = [8, 8], strides = [1, 1]} : vector<8x32xf32> to vector<8x8xf32>
    %19 = vector.shape_cast %18 : vector<8x8xf32> to vector<1x8x8xf32>
    %20 = vector.extract_strided_slice %9 {offsets = [0, 24], sizes = [8, 8], strides = [1, 1]} : vector<8x32xf32> to vector<8x8xf32>
    %21 = vector.shape_cast %20 : vector<8x8xf32> to vector<1x8x8xf32>
    %22 = tpu.concatenate %15, %17, %19, %21 in 0 : vector<1x8x8xf32>, vector<1x8x8xf32>, vector<1x8x8xf32>, vector<1x8x8xf32> -> vector<4x8x8xf32>
    %23 = vector.extract_strided_slice %11 {offsets = [0, 0], sizes = [8, 8], strides = [1, 1]} : vector<8x32xf32> to vector<8x8xf32>
    %24 = vector.shape_cast %23 : vector<8x8xf32> to vector<1x8x8xf32>
    %25 = vector.extract_strided_slice %11 {offsets = [0, 8], sizes = [8, 8], strides = [1, 1]} : vector<8x32xf32> to vector<8x8xf32>
    %26 = vector.shape_cast %25 : vector<8x8xf32> to vector<1x8x8xf32>
    %27 = vector.extract_strided_slice %11 {offsets = [0, 16], sizes = [8, 8], strides = [1, 1]} : vector<8x32xf32> to vector<8x8xf32>
    %28 = vector.shape_cast %27 : vector<8x8xf32> to vector<1x8x8xf32>
    %29 = vector.extract_strided_slice %11 {offsets = [0, 24], sizes = [8, 8], strides = [1, 1]} : vector<8x32xf32> to vector<8x8xf32>
    %30 = vector.shape_cast %29 : vector<8x8xf32> to vector<1x8x8xf32>
    %31 = tpu.concatenate %24, %26, %28, %30 in 0 : vector<1x8x8xf32>, vector<1x8x8xf32>, vector<1x8x8xf32>, vector<1x8x8xf32> -> vector<4x8x8xf32>
    %32 = vector.extract_strided_slice %13 {offsets = [0, 0], sizes = [8, 8], strides = [1, 1]} : vector<8x32xf32> to vector<8x8xf32>
    %33 = vector.shape_cast %32 : vector<8x8xf32> to vector<1x8x8xf32>
    %34 = vector.extract_strided_slice %13 {offsets = [0, 8], sizes = [8, 8], strides = [1, 1]} : vector<8x32xf32> to vector<8x8xf32>
    %35 = vector.shape_cast %34 : vector<8x8xf32> to vector<1x8x8xf32>
    %36 = vector.extract_strided_slice %13 {offsets = [0, 16], sizes = [8, 8], strides = [1, 1]} : vector<8x32xf32> to vector<8x8xf32>
    %37 = vector.shape_cast %36 : vector<8x8xf32> to vector<1x8x8xf32>
    %38 = vector.extract_strided_slice %13 {offsets = [0, 24], sizes = [8, 8], strides = [1, 1]} : vector<8x32xf32> to vector<8x8xf32>
    %39 = vector.shape_cast %38 : vector<8x8xf32> to vector<1x8x8xf32>
    %40 = tpu.concatenate %33, %35, %37, %39 in 0 : vector<1x8x8xf32>, vector<1x8x8xf32>, vector<1x8x8xf32>, vector<1x8x8xf32> -> vector<4x8x8xf32>
    "tpu.trace_start"() <{level = 10 : i32, message = "gqd,gkd->gqk"}> : () -> ()
    %cst_17 = arith.constant dense<0.000000e+00> : vector<4x8x8xf32>
    %41 = tpu.matmul %22, %31, %cst_17 {dimension_numbers = #tpu.dot_dimension_numbers<[2], [2], [1], [1], [0, 0, 0, 1, 1, 1], [0], [0]>} : vector<4x8x8xf32>, vector<4x8x8xf32>, vector<4x8x8xf32> -> vector<4x8x8xf32>
    "tpu.trace_stop"() : () -> ()
    %cst_18 = arith.constant dense<0xFF800000> : vector<4x8xf32>
    %42 = vector.multi_reduction <maximumf>, %41, %cst_18 [2] : vector<4x8x8xf32> to vector<4x8xf32>
    %43 = vector.shape_cast %42 : vector<4x8xf32> to vector<4x8x1xf32>
    %44 = vector.broadcast %43 : vector<4x8x1xf32> to vector<4x8x8xf32>
    %45 = arith.subf %41, %44 : vector<4x8x8xf32>
    %46 = math.exp %45 : vector<4x8x8xf32>
    %cst_19 = arith.constant dense<0.000000e+00> : vector<4x8xf32>
    %47 = vector.multi_reduction <add>, %46, %cst_19 [2] : vector<4x8x8xf32> to vector<4x8xf32>
    %48 = vector.shape_cast %47 : vector<4x8xf32> to vector<4x8x1xf32>
    %cst_20 = arith.constant 1.000000e+00 : f32
    %49 = vector.broadcast %cst_20 : f32 to vector<4x8x1xf32>
    %50 = arith.divf %49, %48 : vector<4x8x1xf32>
    %51 = vector.broadcast %50 : vector<4x8x1xf32> to vector<4x8x8xf32>
    %52 = arith.mulf %46, %51 : vector<4x8x8xf32>
    "tpu.trace_start"() <{level = 10 : i32, message = "gqk,gkd->gqd"}> : () -> ()
    %cst_21 = arith.constant dense<0.000000e+00> : vector<4x8x8xf32>
    %53 = tpu.matmul %52, %40, %cst_21 {dimension_numbers = #tpu.dot_dimension_numbers<[2], [1], [1], [2], [0, 0, 0, 1, 1, 2], [0], [0]>} : vector<4x8x8xf32>, vector<4x8x8xf32>, vector<4x8x8xf32> -> vector<4x8x8xf32>
    "tpu.trace_stop"() : () -> ()
    %54 = vector.extract_strided_slice %53 {offsets = [0, 0, 0], sizes = [1, 8, 8], strides = [1, 1, 1]} : vector<4x8x8xf32> to vector<1x8x8xf32>
    %55 = vector.extract_strided_slice %53 {offsets = [1, 0, 0], sizes = [1, 8, 8], strides = [1, 1, 1]} : vector<4x8x8xf32> to vector<1x8x8xf32>
    %56 = vector.extract_strided_slice %53 {offsets = [2, 0, 0], sizes = [1, 8, 8], strides = [1, 1, 1]} : vector<4x8x8xf32> to vector<1x8x8xf32>
    %57 = vector.extract_strided_slice %53 {offsets = [3, 0, 0], sizes = [1, 8, 8], strides = [1, 1, 1]} : vector<4x8x8xf32> to vector<1x8x8xf32>
    %58 = tpu.concatenate %54, %55, %56, %57 in 2 : vector<1x8x8xf32>, vector<1x8x8xf32>, vector<1x8x8xf32>, vector<1x8x8xf32> -> vector<1x8x32xf32>
    %59 = vector.shape_cast %58 : vector<1x8x32xf32> to vector<8x32xf32>
    %c0_22 = arith.constant 0 : index
    %c0_23 = arith.constant 0 : index
    %60 = vector.load %arg7[%c0_22, %c0_23] : memref<32x32xf32, #tpu.memory_space<vmem>>, vector<32x32xf32>
    %cst_24 = arith.constant dense<0.000000e+00> : vector<8x32xf32>
    %61 = tpu.matmul %59, %60, %cst_24 {dimension_numbers = #tpu.dot_dimension_numbers<[1], [0], [0], [1], [0, 0, 1, 1], [], []>} : vector<8x32xf32>, vector<32x32xf32>, vector<8x32xf32> -> vector<8x32xf32>
    %62 = vector.shape_cast %61 : vector<8x32xf32> to vector<1x8x32xf32>
    %c0_25 = arith.constant 0 : index
    %c0_26 = arith.constant 0 : index
    %c0_27 = arith.constant 0 : index
    %63 = vector.load %arg8[%c0_25, %c0_26, %c0_27] : memref<1x8x32xf32, #tpu.memory_space<vmem>>, vector<1x8x32xf32>
    tpu.vector_store %arg8[%c0_25, %c0_26, %c0_27], %62 {strides = array<i32>} : memref<1x8x32xf32, #tpu.memory_space<vmem>>, vector<1x8x32xf32>,
    return
  }
  func.func @transform_0(%arg0: i32) -> (i32, i32, i32) {
    %c0_i32 = arith.constant 0 : i32
    %c0_i32_0 = arith.constant 0 : i32
    %c0_i32_1 = arith.constant 0 : i32
    return %arg0, %c0_i32, %c0_i32_0 : i32, i32, i32
  }
  func.func @transform_1(%arg0: i32) -> (i32, i32, i32) {
    %c0_i32 = arith.constant 0 : i32
    %c0_i32_0 = arith.constant 0 : i32
    %c0_i32_1 = arith.constant 0 : i32
    return %arg0, %c0_i32, %c0_i32_0 : i32, i32, i32
  }
  func.func @transform_2(%arg0: i32) -> (i32, i32, i32) {
    %c0_i32 = arith.constant 0 : i32
    %c0_i32_0 = arith.constant 0 : i32
    %c0_i32_1 = arith.constant 0 : i32
    return %arg0, %c0_i32, %c0_i32_0 : i32, i32, i32
  }
  func.func @transform_3(%arg0: i32) -> (i32, i32) {
    %c0_i32 = arith.constant 0 : i32
    %c0_i32_0 = arith.constant 0 : i32
    %c0_i32_1 = arith.constant 0 : i32
    return %c0_i32, %c0_i32_0 : i32, i32
  }
  func.func @transform_4(%arg0: i32) -> (i32, i32) {
    %c0_i32 = arith.constant 0 : i32
    %c0_i32_0 = arith.constant 0 : i32
    %c0_i32_1 = arith.constant 0 : i32
    return %c0_i32, %c0_i32_0 : i32, i32
  }
  func.func @transform_5(%arg0: i32) -> (i32, i32) {
    %c0_i32 = arith.constant 0 : i32
    %c0_i32_0 = arith.constant 0 : i32
    %c0_i32_1 = arith.constant 0 : i32
    return %c0_i32, %c0_i32_0 : i32, i32
  }
  func.func @transform_6(%arg0: i32) -> (i32, i32) {
    %c0_i32 = arith.constant 0 : i32
    %c0_i32_0 = arith.constant 0 : i32
    %c0_i32_1 = arith.constant 0 : i32
    return %c0_i32, %c0_i32_0 : i32, i32
  }
  func.func @transform_7(%arg0: i32) -> (i32, i32, i32) {
    %c0_i32 = arith.constant 0 : i32
    %c0_i32_0 = arith.constant 0 : i32
    %c0_i32_1 = arith.constant 0 : i32
    return %arg0, %c0_i32, %c0_i32_0 : i32, i32, i32
  }
}

</mosaic_0001>

<llo_original>
// kernel: tpu_custom_call.1
$region0: #{tpu_custom_call.1}
  #allocation0 [shape = 'u32[]', space=smem, size = 0x4, offset = 0x4, fixed_abs, tag = 'smem constant byte address 0x4 - core index']
  #allocation1 [shape = 'u32[144,128]{1,0:T(1,128)}', space=vmem, size = 0x12000, scoped, tag = 'internal scratch']
  %s0 = inlined_call_operand.hbm [shape: f32[2,8,32], index: 0, kind: input, shape index: {}]
  %s1 = inlined_call_operand.hbm [shape: f32[2,8,32], index: 1, kind: input, shape index: {}]
  %s2 = inlined_call_operand.hbm [shape: f32[2,8,32], index: 2, kind: input, shape index: {}]
  %s3 = inlined_call_operand.hbm [shape: f32[32,32], index: 3, kind: input, shape index: {}]
  %s4 = inlined_call_operand.hbm [shape: f32[32,32], index: 4, kind: input, shape index: {}]
  %s5 = inlined_call_operand.hbm [shape: f32[32,32], index: 5, kind: input, shape index: {}]
  %s6 = inlined_call_operand.hbm [shape: f32[32,32], index: 6, kind: input, shape index: {}]
  %s7 = inlined_call_operand.hbm [shape: f32[2,8,32], index: 7, kind: output, shape index: {}]
  %s8 = sld [smem:[#allocation0]]
  $region89: #{tpu_custom_call.1} parent=0
    _
  %s10 = ssub.s32 1, %s8
  %s11 = scalar_select 0, %s10, %s8
  $region1: #{tpu_custom_call.1} parent=0
    #allocation2 [shape = 'u8[8192]{0}', space=vmem, size = 0x2000, scoped, tag = 'input window, operand 0']
    #allocation3 [shape = 's32[2]{0}', space=sflag, size = 0x8, scoped, tag = 'scoped memory for tpu_custom_call.1']
    #allocation4 [shape = 's32[2]{0}', space=sflag, size = 0x8, scoped, tag = 'scoped memory for tpu_custom_call.1']
    #allocation5 [shape = 'u8[8192]{0}', space=vmem, size = 0x2000, scoped, tag = 'input window, operand 1']
    #allocation6 [shape = 's32[2]{0}', space=sflag, size = 0x8, scoped, tag = 'scoped memory for tpu_custom_call.1']
    #allocation7 [shape = 'u8[8192]{0}', space=vmem, size = 0x2000, scoped, tag = 'input window, operand 2']
    #allocation8 [shape = 'u8[16384]{0}', space=vmem, size = 0x4000, scoped, tag = 'input window, operand 3, single buffered']
    #allocation9 [shape = 's32[1]{0}', space=sflag, size = 0x4, scoped, tag = 'scoped memory for tpu_custom_call.1']
    #allocation10 [shape = 'u8[16384]{0}', space=vmem, size = 0x4000, scoped, tag = 'input window, operand 4, single buffered']
    #allocation11 [shape = 'u8[16384]{0}', space=vmem, size = 0x4000, scoped, tag = 'input window, operand 5, single buffered']
    #allocation12 [shape = 's32[1]{0}', space=sflag, size = 0x4, scoped, tag = 'scoped memory for tpu_custom_call.1']
    #allocation13 [shape = 'u8[16384]{0}', space=vmem, size = 0x4000, scoped, tag = 'input window, operand 6, single buffered']
    #allocation14 [shape = 'u8[8192]{0}', space=vmem, size = 0x2000, scoped, tag = 'output window, operand 0']
    %12 = vsyncpa [#allocation3], 0
    %s13 = scalar_lea.sflag [#allocation3], 1
    %14 = vsyncpa %s13, 0
    %15 = vsyncpa [#allocation6], 0
    %s16 = scalar_lea.sflag [#allocation6], 1
    %17 = vsyncpa %s16, 0
    %18 = vsyncpa [#allocation9], 0
    %19 = vsyncpa [#allocation12], 0
    %20 = vsyncpa [#allocation4], 0
    %s21 = scalar_lea.sflag [#allocation4], 1
    %22 = vsyncpa %s21, 0
    loop: start=0, step=1, limit=4
    $region2: #{tpu_custom_call.1} parent=1 // loop_pre_header
      _
    $region3: #{tpu_custom_call.1} parent=1 // loop_header
      %s24 = sphi 0, %s28
      %p25 = scmp.ge.s32.totalorder %s24, 4
      %s34 = sphi 0, %s36
      %s37 = sphi 0, %s34
      %s38 = sphi 0, %s37
      %s54 = sphi 0, %s38
      %s60 = sphi 0, %s62
      %s63 = sphi 0, %s60
      %s64 = sphi 0, %s63
      %s80 = sphi 0, %s64
      %s86 = sphi 0, %s88
      %s89 = sphi 0, %s86
      %s90 = sphi 0, %s89
      %s106 = sphi 0, %s90
      %s110 = sphi 0, %s110
      %s112 = sphi 0, %s110
      %s113 = sphi 0, %s112
      %s127 = sphi 0, %s113
      %s131 = sphi 0, %s131
      %s133 = sphi 0, %s131
      %s134 = sphi 0, %s133
      %s148 = sphi 0, %s134
      %s152 = sphi 0, %s152
      %s154 = sphi 0, %s152
      %s155 = sphi 0, %s154
      %s169 = sphi 0, %s155
      %s173 = sphi 0, %s173
      %s175 = sphi 0, %s173
      %s176 = sphi 0, %s175
      %s190 = sphi 0, %s176
      %s196 = sphi 0, %s198
      %s199 = sphi 0, %s196
      %s200 = sphi 0, %s199
      %s216 = sphi 0, %s200
    $region4: #{tpu_custom_call.1} parent=1 // loop_header_branch
      %27 = sbr.rel (%p25) target = $region8
    $region5: #{tpu_custom_call.1} parent=1 // loop_body
      %s29 = ssub.s32 %s24, 1
      %s30 = ssub.s32 %s24, 2
      %s31 = sadd.s32 %s24, 1
      %s32 = ssub.s32 %s24, %s31
      %p33 = scmp.eq.s32.totalorder %s32, 0
      %s35 = sadd.s32 %s34, 1
      %s36 = scalar_select %p33, %s34, %s35
      %p39 = pneg %p33
      %p40 = scmp.eq.s32.totalorder %s24, 1
      %p41 = por %p39, %p40
      %p42 = scmp.ne.s32.totalorder %s34, %s37
      %p43 = scmp.eq.s32.totalorder %s24, 0
      %p44 = por %p42, %p43
      %p45 = scmp.ne.s32.totalorder %s34, %s37
      %p46 = scmp.eq.s32.totalorder %s29, 1
      %p47 = por %p45, %p46
      %p48 = scmp.ne.s32.totalorder %s37, %s38
      %p49 = scmp.eq.s32.totalorder %s29, 0
      %p50 = por %p48, %p49
      %p51 = scmp.ne.s32.totalorder %s37, %s38
      %p52 = scmp.eq.s32.totalorder %s30, 1
      %p53 = por %p51, %p52
      %p55 = scmp.ne.s32.totalorder %s38, %s54
      %p56 = scmp.eq.s32.totalorder %s30, 0
      %p57 = por %p55, %p56
      %s58 = ssub.s32 %s24, %s31
      %p59 = scmp.eq.s32.totalorder %s58, 0
      %s61 = sadd.s32 %s60, 1
      %s62 = scalar_select %p59, %s60, %s61
      %p65 = pneg %p59
      %p66 = scmp.eq.s32.totalorder %s24, 1
      %p67 = por %p65, %p66
      %p68 = scmp.ne.s32.totalorder %s60, %s63
      %p69 = scmp.eq.s32.totalorder %s24, 0
      %p70 = por %p68, %p69
      %p71 = scmp.ne.s32.totalorder %s60, %s63
      %p72 = scmp.eq.s32.totalorder %s29, 1
      %p73 = por %p71, %p72
      %p74 = scmp.ne.s32.totalorder %s63, %s64
      %p75 = scmp.eq.s32.totalorder %s29, 0
      %p76 = por %p74, %p75
      %p77 = scmp.ne.s32.totalorder %s63, %s64
      %p78 = scmp.eq.s32.totalorder %s30, 1
      %p79 = por %p77, %p78
      %p81 = scmp.ne.s32.totalorder %s64, %s80
      %p82 = scmp.eq.s32.totalorder %s30, 0
      %p83 = por %p81, %p82
      %s84 = ssub.s32 %s24, %s31
      %p85 = scmp.eq.s32.totalorder %s84, 0
      %s87 = sadd.s32 %s86, 1
      %s88 = scalar_select %p85, %s86, %s87
      %p91 = pneg %p85
      %p92 = scmp.eq.s32.totalorder %s24, 1
      %p93 = por %p91, %p92
      %p94 = scmp.ne.s32.totalorder %s86, %s89
      %p95 = scmp.eq.s32.totalorder %s24, 0
      %p96 = por %p94, %p95
      %p97 = scmp.ne.s32.totalorder %s86, %s89
      %p98 = scmp.eq.s32.totalorder %s29, 1
      %p99 = por %p97, %p98
      %p100 = scmp.ne.s32.totalorder %s89, %s90
      %p101 = scmp.eq.s32.totalorder %s29, 0
      %p102 = por %p100, %p101
      %p103 = scmp.ne.s32.totalorder %s89, %s90
      %p104 = scmp.eq.s32.totalorder %s30, 1
      %p105 = por %p103, %p104
      %p107 = scmp.ne.s32.totalorder %s90, %s106
      %p108 = scmp.eq.s32.totalorder %s30, 0
      %p109 = por %p107, %p108
      %s111 = sadd.s32 %s110, 1
      %p114 = scmp.eq.s32.totalorder %s24, 1
      %p115 = scmp.ne.s32.totalorder %s110, %s112
      %p116 = scmp.eq.s32.totalorder %s24, 0
      %p117 = por %p115, %p116
      %p118 = scmp.ne.s32.totalorder %s110, %s112
      %p119 = scmp.eq.s32.totalorder %s29, 1
      %p120 = por %p118, %p119
      %p121 = scmp.ne.s32.totalorder %s112, %s113
      %p122 = scmp.eq.s32.totalorder %s29, 0
      %p123 = por %p121, %p122
      %p124 = scmp.ne.s32.totalorder %s112, %s113
      %p125 = scmp.eq.s32.totalorder %s30, 1
      %p126 = por %p124, %p125
      %p128 = scmp.ne.s32.totalorder %s113, %s127
      %p129 = scmp.eq.s32.totalorder %s30, 0
      %p130 = por %p128, %p129
      %s132 = sadd.s32 %s131, 1
      %p135 = scmp.eq.s32.totalorder %s24, 1
      %p136 = scmp.ne.s32.totalorder %s131, %s133
      %p137 = scmp.eq.s32.totalorder %s24, 0
      %p138 = por %p136, %p137
      %p139 = scmp.ne.s32.totalorder %s131, %s133
      %p140 = scmp.eq.s32.totalorder %s29, 1
      %p141 = por %p139, %p140
      %p142 = scmp.ne.s32.totalorder %s133, %s134
      %p143 = scmp.eq.s32.totalorder %s29, 0
      %p144 = por %p142, %p143
      %p145 = scmp.ne.s32.totalorder %s133, %s134
      %p146 = scmp.eq.s32.totalorder %s30, 1
      %p147 = por %p145, %p146
      %p149 = scmp.ne.s32.totalorder %s134, %s148
      %p150 = scmp.eq.s32.totalorder %s30, 0
      %p151 = por %p149, %p150
      %s153 = sadd.s32 %s152, 1
      %p156 = scmp.eq.s32.totalorder %s24, 1
      %p157 = scmp.ne.s32.totalorder %s152, %s154
      %p158 = scmp.eq.s32.totalorder %s24, 0
      %p159 = por %p157, %p158
      %p160 = scmp.ne.s32.totalorder %s152, %s154
      %p161 = scmp.eq.s32.totalorder %s29, 1
      %p162 = por %p160, %p161
      %p163 = scmp.ne.s32.totalorder %s154, %s155
      %p164 = scmp.eq.s32.totalorder %s29, 0
      %p165 = por %p163, %p164
      %p166 = scmp.ne.s32.totalorder %s154, %s155
      %p167 = scmp.eq.s32.totalorder %s30, 1
      %p168 = por %p166, %p167
      %p170 = scmp.ne.s32.totalorder %s155, %s169
      %p171 = scmp.eq.s32.totalorder %s30, 0
      %p172 = por %p170, %p171
      %s174 = sadd.s32 %s173, 1
      %p177 = scmp.eq.s32.totalorder %s24, 1
      %p178 = scmp.ne.s32.totalorder %s173, %s175
      %p179 = scmp.eq.s32.totalorder %s24, 0
      %p180 = por %p178, %p179
      %p181 = scmp.ne.s32.totalorder %s173, %s175
      %p182 = scmp.eq.s32.totalorder %s29, 1
      %p183 = por %p181, %p182
      %p184 = scmp.ne.s32.totalorder %s175, %s176
      %p185 = scmp.eq.s32.totalorder %s29, 0
      %p186 = por %p184, %p185
      %p187 = scmp.ne.s32.totalorder %s175, %s176
      %p188 = scmp.eq.s32.totalorder %s30, 1
      %p189 = por %p187, %p188
      %p191 = scmp.ne.s32.totalorder %s176, %s190
      %p192 = scmp.eq.s32.totalorder %s30, 0
      %p193 = por %p191, %p192
      %s194 = ssub.s32 %s24, %s31
      %p195 = scmp.eq.s32.totalorder %s194, 0
      %s197 = sadd.s32 %s196, 1
      %s198 = scalar_select %p195, %s196, %s197
      %p201 = pneg %p195
      %p202 = scmp.eq.s32.totalorder %s24, 1
      %p203 = por %p201, %p202
      %p204 = scmp.ne.s32.totalorder %s196, %s199
      %p205 = scmp.eq.s32.totalorder %s24, 0
      %p206 = por %p204, %p205
      %p207 = scmp.ne.s32.totalorder %s196, %s199
      %p208 = scmp.eq.s32.totalorder %s29, 1
      %p209 = por %p207, %p208
      %p210 = scmp.ne.s32.totalorder %s199, %s200
      %p211 = scmp.eq.s32.totalorder %s29, 0
      %p212 = por %p210, %p211
      %p213 = scmp.ne.s32.totalorder %s199, %s200
      %p214 = scmp.eq.s32.totalorder %s30, 1
      %p215 = por %p213, %p214
      %p217 = scmp.ne.s32.totalorder %s200, %s216
      %p218 = scmp.eq.s32.totalorder %s30, 0
      %p219 = por %p217, %p218
      %p220 = scmp.le.s32.totalorder 1, %s24
      %p221 = scmp.lt.s32.totalorder %s24, 3
      %p222 = pnand %p220, %p221
      %p223 = pneg %p222
      // Predicated region
      $region9: #{tpu_custom_call.1} parent=5 // pred_check
        _
      $region10: #{tpu_custom_call.1} parent=5 // pred_check_branch
        %225 = sbr.rel (%p222) target = $region12
      $region11: #{tpu_custom_call.1} parent=5 // pred_region
        %s226 = ssub.s32 %s24, 1
        // Predicated region
        $region13: #{tpu_custom_call.1} parent=11 // pred_check
          %p227 = pneg %p123
        $region14: #{tpu_custom_call.1} parent=11 // pred_check_branch
          %229 = sbr.rel (%p227) target = $region16
        $region15: #{tpu_custom_call.1} parent=11 // pred_region
          %s231 = ssub.s32 512, 512
          %232 = vsyncadd [#allocation9], %s231
          %s233 = sshll.u32 [#allocation8], 4
          %s234 = int_to_ptr.vmem [resolvable:$true] %s233
          %239 = dma.hbm_to_vmem [thread:$0]  %s3, 512, %s234, [#allocation9], 128, 128, 8
        $region16: #{tpu_custom_call.1} parent=11 // pred_fallthru
          _
        // Predicated region
        $region17: #{tpu_custom_call.1} parent=11 // pred_check
          %p240 = pneg %p144
        $region18: #{tpu_custom_call.1} parent=11 // pred_check_branch
          %242 = sbr.rel (%p240) target = $region20
        $region19: #{tpu_custom_call.1} parent=11 // pred_region
          %s244 = ssub.s32 512, 512
          %245 = vsyncadd [#allocation9], %s244
          %s246 = sshll.u32 [#allocation10], 4
          %s247 = int_to_ptr.vmem [resolvable:$true] %s246
          %252 = dma.hbm_to_vmem [thread:$0]  %s4, 512, %s247, [#allocation9], 128, 128, 8
        $region20: #{tpu_custom_call.1} parent=11 // pred_fallthru
          _
        // Predicated region
        $region21: #{tpu_custom_call.1} parent=11 // pred_check
          %p253 = pneg %p165
        $region22: #{tpu_custom_call.1} parent=11 // pred_check_branch
          %255 = sbr.rel (%p253) target = $region24
        $region23: #{tpu_custom_call.1} parent=11 // pred_region
          %s257 = ssub.s32 512, 512
          %258 = vsyncadd [#allocation12], %s257
          %s259 = sshll.u32 [#allocation11], 4
          %s260 = int_to_ptr.vmem [resolvable:$true] %s259
          %265 = dma.hbm_to_vmem [thread:$0]  %s5, 512, %s260, [#allocation12], 128, 128, 8
        $region24: #{tpu_custom_call.1} parent=11 // pred_fallthru
          _
        // Predicated region
        $region25: #{tpu_custom_call.1} parent=11 // pred_check
          %p266 = pneg %p186
        $region26: #{tpu_custom_call.1} parent=11 // pred_check_branch
          %268 = sbr.rel (%p266) target = $region28
        $region27: #{tpu_custom_call.1} parent=11 // pred_region
          %s270 = ssub.s32 512, 512
          %271 = vsyncadd [#allocation12], %s270
          %s272 = sshll.u32 [#allocation13], 4
          %s273 = int_to_ptr.vmem [resolvable:$true] %s272
          %278 = dma.hbm_to_vmem [thread:$0]  %s6, 512, %s273, [#allocation12], 128, 128, 8
        $region28: #{tpu_custom_call.1} parent=11 // pred_fallthru
          _
      $region12: #{tpu_custom_call.1} parent=5 // pred_fallthru
        _
      %p279 = scmp.lt.s32.totalorder %s24, 2
      // Predicated region
      $region29: #{tpu_custom_call.1} parent=5 // pred_check
        %p280 = pneg %p279
      $region30: #{tpu_custom_call.1} parent=5 // pred_check_branch
        %282 = sbr.rel (%p280) target = $region32
      $region31: #{tpu_custom_call.1} parent=5 // pred_region
        // Predicated region
        $region33: #{tpu_custom_call.1} parent=31 // pred_check
          %p283 = pneg %p44
        $region34: #{tpu_custom_call.1} parent=31 // pred_check_branch
          %285 = sbr.rel (%p283) target = $region36
        $region35: #{tpu_custom_call.1} parent=31 // pred_region
          %s286 = sand.u32 %s34, 1
          %s287 = scalar_lea.sflag [#allocation3], %s286
          %s288 = sand.u32 %s34, 1
          %s289 = smul.addr %s288, 8
          %s290 = scalar_lea.vmem [#allocation2], %s289
          %s292 = ssub.s32 128, 128
          %293 = vsyncadd %s287, %s292
          %s294 = smul.addr %s24, 128
          %s295 = scalar_lea.hbm %s0, %s294
          %s297 = sshll.u32 %s290, 4
          %s298 = int_to_ptr.vmem [resolvable:$true] %s297
          %300 = dma.hbm_to_vmem [thread:$0]  %s295, 128, %s298, %s287
        $region36: #{tpu_custom_call.1} parent=31 // pred_fallthru
          _
        // Predicated region
        $region37: #{tpu_custom_call.1} parent=31 // pred_check
          %p301 = pneg %p70
        $region38: #{tpu_custom_call.1} parent=31 // pred_check_branch
          %303 = sbr.rel (%p301) target = $region40
        $region39: #{tpu_custom_call.1} parent=31 // pred_region
          %s304 = sand.u32 %s24, 1
          %s305 = scalar_lea.sflag [#allocation6], %s304
          %s306 = sand.u32 %s60, 1
          %s307 = smul.addr %s306, 8
          %s308 = scalar_lea.vmem [#allocation5], %s307
          %s310 = ssub.s32 128, 128
          %311 = vsyncadd %s305, %s310
          %s312 = smul.addr %s24, 128
          %s313 = scalar_lea.hbm %s1, %s312
          %s315 = sshll.u32 %s308, 4
          %s316 = int_to_ptr.vmem [resolvable:$true] %s315
          %318 = dma.hbm_to_vmem [thread:$0]  %s313, 128, %s316, %s305
        $region40: #{tpu_custom_call.1} parent=31 // pred_fallthru
          _
        // Predicated region
        $region41: #{tpu_custom_call.1} parent=31 // pred_check
          %p319 = pneg %p96
        $region42: #{tpu_custom_call.1} parent=31 // pred_check_branch
          %321 = sbr.rel (%p319) target = $region44
        $region43: #{tpu_custom_call.1} parent=31 // pred_region
          %s322 = sand.u32 %s24, 1
          %s323 = scalar_lea.sflag [#allocation6], %s322
          %s324 = sand.u32 %s86, 1
          %s325 = smul.addr %s324, 8
          %s326 = scalar_lea.vmem [#allocation7], %s325
          %s328 = ssub.s32 128, 128
          %329 = vsyncadd %s323, %s328
          %s330 = smul.addr %s24, 128
          %s331 = scalar_lea.hbm %s2, %s330
          %s333 = sshll.u32 %s326, 4
          %s334 = int_to_ptr.vmem [resolvable:$true] %s333
          %336 = dma.hbm_to_vmem [thread:$0]  %s331, 128, %s334, %s323
        $region44: #{tpu_custom_call.1} parent=31 // pred_fallthru
          _
      $region32: #{tpu_custom_call.1} parent=5 // pred_fallthru
        _
      %p337 = scmp.le.s32.totalorder 1, %s24
      %p338 = scmp.lt.s32.totalorder %s24, 3
      %p339 = pnand %p337, %p338
      %p340 = pneg %p339
      // Predicated region
      $region45: #{tpu_custom_call.1} parent=5 // pred_check
        _
      $region46: #{tpu_custom_call.1} parent=5 // pred_check_branch
        %342 = sbr.rel (%p339) target = $region48
      $region47: #{tpu_custom_call.1} parent=5 // pred_region
        %s343 = ssub.s32 %s24, 1
        %s344 = sand.u32 %s37, 1
        %s345 = scalar_lea.sflag [#allocation3], %s344
        %s346 = sand.u32 %s37, 1
        %s347 = smul.addr %s346, 8
        %s348 = scalar_lea.vmem [#allocation2], %s347
        // Predicated region
        $region49: #{tpu_custom_call.1} parent=47 // pred_check
          %p349 = pneg %p50
        $region50: #{tpu_custom_call.1} parent=47 // pred_check_branch
          %351 = sbr.rel (%p349) target = $region52
        $region51: #{tpu_custom_call.1} parent=47 // pred_region
          %352 = dma.done %s345, 128
        $region52: #{tpu_custom_call.1} parent=47 // pred_fallthru
          _
        %s353 = sand.u32 %s29, 1
        %s354 = scalar_lea.sflag [#allocation6], %s353
        %s355 = sand.u32 %s63, 1
        %s356 = smul.addr %s355, 8
        %s357 = scalar_lea.vmem [#allocation5], %s356
        // Predicated region
        $region53: #{tpu_custom_call.1} parent=47 // pred_check
          %p358 = pneg %p76
        $region54: #{tpu_custom_call.1} parent=47 // pred_check_branch
          %360 = sbr.rel (%p358) target = $region56
        $region55: #{tpu_custom_call.1} parent=47 // pred_region
          %361 = dma.done %s354, 128
        $region56: #{tpu_custom_call.1} parent=47 // pred_fallthru
          _
        %s362 = sand.u32 %s29, 1
        %s363 = scalar_lea.sflag [#allocation6], %s362
        %s364 = sand.u32 %s89, 1
        %s365 = smul.addr %s364, 8
        %s366 = scalar_lea.vmem [#allocation7], %s365
        // Predicated region
        $region57: #{tpu_custom_call.1} parent=47 // pred_check
          %p367 = pneg %p102
        $region58: #{tpu_custom_call.1} parent=47 // pred_check_branch
          %369 = sbr.rel (%p367) target = $region60
        $region59: #{tpu_custom_call.1} parent=47 // pred_region
          %370 = dma.done %s363, 128
        $region60: #{tpu_custom_call.1} parent=47 // pred_fallthru
          _
        // Predicated region
        $region61: #{tpu_custom_call.1} parent=47 // pred_check
          %p371 = pneg %p123
        $region62: #{tpu_custom_call.1} parent=47 // pred_check_branch
          %373 = sbr.rel (%p371) target = $region64
        $region63: #{tpu_custom_call.1} parent=47 // pred_region
          %374 = dma.done [#allocation9], 512
        $region64: #{tpu_custom_call.1} parent=47 // pred_fallthru
          _
        // Predicated region
        $region65: #{tpu_custom_call.1} parent=47 // pred_check
          %p375 = pneg %p144
        $region66: #{tpu_custom_call.1} parent=47 // pred_check_branch
          %377 = sbr.rel (%p375) target = $region68
        $region67: #{tpu_custom_call.1} parent=47 // pred_region
          %378 = dma.done [#allocation9], 512
        $region68: #{tpu_custom_call.1} parent=47 // pred_fallthru
          _
        // Predicated region
        $region69: #{tpu_custom_call.1} parent=47 // pred_check
          %p379 = pneg %p165
        $region70: #{tpu_custom_call.1} parent=47 // pred_check_branch
          %381 = sbr.rel (%p379) target = $region72
        $region71: #{tpu_custom_call.1} parent=47 // pred_region
          %382 = dma.done [#allocation12], 512
        $region72: #{tpu_custom_call.1} parent=47 // pred_fallthru
          _
        // Predicated region
        $region73: #{tpu_custom_call.1} parent=47 // pred_check
          %p383 = pneg %p186
        $region74: #{tpu_custom_call.1} parent=47 // pred_check_branch
          %385 = sbr.rel (%p383) target = $region76
        $region75: #{tpu_custom_call.1} parent=47 // pred_region
          %386 = dma.done [#allocation12], 512
        $region76: #{tpu_custom_call.1} parent=47 // pred_fallthru
          _
        %s387 = sand.u32 %s37, 1
        %s388 = scalar_lea.sflag [#allocation3], %s387
        %s389 = sand.u32 %s37, 1
        %s390 = smul.addr %s389, 8
        %s391 = scalar_lea.vmem [#allocation2], %s390
        %p392 = pneg %p50
        %p393 = pneg %p47
        %s394 = sand.u32 %s29, 1
        %s395 = scalar_lea.sflag [#allocation6], %s394
        %s396 = sand.u32 %s63, 1
        %s397 = smul.addr %s396, 8
        %s398 = scalar_lea.vmem [#allocation5], %s397
        %p399 = pneg %p76
        %p400 = pneg %p73
        %s401 = sand.u32 %s29, 1
        %s402 = scalar_lea.sflag [#allocation6], %s401
        %s403 = sand.u32 %s89, 1
        %s404 = smul.addr %s403, 8
        %s405 = scalar_lea.vmem [#allocation7], %s404
        %p406 = pneg %p102
        %p407 = pneg %p99
        %p408 = pneg %p123
        %p409 = pneg %p120
        %p410 = pneg %p144
        %p411 = pneg %p141
        %p412 = pneg %p165
        %p413 = pneg %p162
        %p414 = pneg %p186
        %p415 = pneg %p183
        %p416 = pneg %p212
        %p417 = pneg %p209
        %s418 = sand.u32 %s199, 1
        %s419 = scalar_lea.sflag [#allocation4], %s418
        %s420 = sand.u32 %s199, 1
        %s421 = smul.addr %s420, 8
        %s422 = scalar_lea.vmem [#allocation14], %s421
        %v423 = vld [vmem:[%s348] sm:$0xff]
        %v424 = vld [vmem:[%s357] sm:$0xff]
        %v425 = vld [vmem:[%s366] sm:$0xff]
        %v426 = vld [vmem:[#allocation8] sm:$0xff]
        %v427 = vld [vmem:[#allocation8 + $0x8] sm:$0xff]
        %v428 = vld [vmem:[#allocation8 + $0x10] sm:$0xff]
        %v429 = vld [vmem:[#allocation8 + $0x18] sm:$0xff]
        %vm430 = vcmask 261120
        %v432 = vsel %vm430, %v423, 0
        %434 = vmatprep.subr.mxu0 0.0
        %435 = vmatpush1.msra.mxu0 0.0
        %436 = vmatprep.subr.mxu0 0.0
        %437 = vmatpush1.msra.mxu0 0.0
        %438 = vmatprep.subr.mxu0 0.0
        %439 = vmatpush1.msra.mxu0 0.0
        %440 = vmatprep.subr.mxu0 0.0
        %441 = vmatpush1.msra.mxu0 0.0
        %442 = vmatprep.subr.mxu0 0.0
        %443 = vmatpush1.msra.mxu0 0.0
        %444 = vmatprep.subr.mxu0 0.0
        %445 = vmatpush1.msra.mxu0 0.0
        %446 = vmatprep.subr.mxu0 0.0
        %447 = vmatpush1.msra.mxu0 0.0
        %448 = vmatprep.subr.mxu0 0.0
        %449 = vmatpush1.msra.mxu0 0.0
        %450 = vmatprep.subr.mxu0 0.0
        %451 = vmatpush1.msra.mxu0 0.0
        %452 = vmatprep.subr.mxu0 0.0
        %453 = vmatpush1.msra.mxu0 0.0
        %454 = vmatprep.subr.mxu0 0.0
        %455 = vmatpush1.msra.mxu0 0.0
        %456 = vmatprep.subr.mxu0 0.0
        %457 = vmatpush1.msra.mxu0 0.0
        %458 = vmatprep.subr.mxu0 0.0
        %459 = vmatpush1.msra.mxu0 %v429
        %460 = vmatprep.subr.mxu0 0.0
        %461 = vmatpush1.msra.mxu0 %v428
        %462 = vmatprep.subr.mxu0 0.0
        %463 = vmatpush1.msra.mxu0 %v427
        %464 = vmatprep.subr.mxu0 0.0
        %465 = vmatpush1.msra.mxu0 %v426
        %466 = vmatprep.subr.mxu0 0.0
        %467 = vmatpush2.msra.mxu0 0.0
        %468 = vmatprep.subr.mxu0 0.0
        %469 = vmatpush2.msra.mxu0 0.0
        %470 = vmatprep.subr.mxu0 0.0
        %471 = vmatpush2.msra.mxu0 0.0
        %472 = vmatprep.subr.mxu0 0.0
        %473 = vmatpush2.msra.mxu0 0.0
        %474 = vmatprep.subr.mxu0 0.0
        %475 = vmatpush2.msra.mxu0 0.0
        %476 = vmatprep.subr.mxu0 0.0
        %477 = vmatpush2.msra.mxu0 0.0
        %478 = vmatprep.subr.mxu0 0.0
        %479 = vmatpush2.msra.mxu0 0.0
        %480 = vmatprep.subr.mxu0 0.0
        %481 = vmatpush2.msra.mxu0 0.0
        %482 = vmatprep.subr.mxu0 0.0
        %483 = vmatpush2.msra.mxu0 0.0
        %484 = vmatprep.subr.mxu0 0.0
        %485 = vmatpush2.msra.mxu0 0.0
        %486 = vmatprep.subr.mxu0 0.0
        %487 = vmatpush2.msra.mxu0 0.0
        %488 = vmatprep.subr.mxu0 0.0
        %489 = vmatpush2.msra.mxu0 0.0
        %490 = vmatprep.subr.mxu0 0.0
        %491 = vmatpush2.msra.mxu0 0.0
        %492 = vmatprep.subr.mxu0 0.0
        %493 = vmatpush2.msra.mxu0 0.0
        %494 = vmatprep.subr.mxu0 0.0
        %495 = vmatpush2.msra.mxu0 0.0
        %496 = vmatprep.subr.mxu0 0.0
        %497 = vmatpush2.msra.mxu0 0.0
        %498 = vmatprep.mubr.f32.mxu0 0.0
        %499 = vmatmul.mubr.f32.gmra.mxu0 %v432
        %v500 = vpop.f32.mrf.mxu0
        %v501 = vadd.f32 0.0, %v500
        %v502 = vpop.f32.mrf.mxu0
        %503 = vdwg.mxu0
        %v504 = vmul.f32 %v501, 0.35355338
        %v505 = vld [vmem:[#allocation10] sm:$0xff]
        %v506 = vld [vmem:[#allocation10 + $0x8] sm:$0xff]
        %v507 = vld [vmem:[#allocation10 + $0x10] sm:$0xff]
        %v508 = vld [vmem:[#allocation10 + $0x18] sm:$0xff]
        %v510 = vsel %vm430, %v424, 0
        %512 = vmatprep.subr.mxu0 0.0
        %513 = vmatpush1.msra.mxu0 0.0
        %514 = vmatprep.subr.mxu0 0.0
        %515 = vmatpush1.msra.mxu0 0.0
        %516 = vmatprep.subr.mxu0 0.0
        %517 = vmatpush1.msra.mxu0 0.0
        %518 = vmatprep.subr.mxu0 0.0
        %519 = vmatpush1.msra.mxu0 0.0
        %520 = vmatprep.subr.mxu0 0.0
        %521 = vmatpush1.msra.mxu0 0.0
        %522 = vmatprep.subr.mxu0 0.0
        %523 = vmatpush1.msra.mxu0 0.0
        %524 = vmatprep.subr.mxu0 0.0
        %525 = vmatpush1.msra.mxu0 0.0
        %526 = vmatprep.subr.mxu0 0.0
        %527 = vmatpush1.msra.mxu0 0.0
        %528 = vmatprep.subr.mxu0 0.0
        %529 = vmatpush1.msra.mxu0 0.0
        %530 = vmatprep.subr.mxu0 0.0
        %531 = vmatpush1.msra.mxu0 0.0
        %532 = vmatprep.subr.mxu0 0.0
        %533 = vmatpush1.msra.mxu0 0.0
        %534 = vmatprep.subr.mxu0 0.0
        %535 = vmatpush1.msra.mxu0 0.0
        %536 = vmatprep.subr.mxu0 0.0
        %537 = vmatpush1.msra.mxu0 %v508
        %538 = vmatprep.subr.mxu0 0.0
        %539 = vmatpush1.msra.mxu0 %v507
        %540 = vmatprep.subr.mxu0 0.0
        %541 = vmatpush1.msra.mxu0 %v506
        %542 = vmatprep.subr.mxu0 0.0
        %543 = vmatpush1.msra.mxu0 %v505
        %544 = vmatprep.subr.mxu0 0.0
        %545 = vmatpush2.msra.mxu0 0.0
        %546 = vmatprep.subr.mxu0 0.0
        %547 = vmatpush2.msra.mxu0 0.0
        %548 = vmatprep.subr.mxu0 0.0
        %549 = vmatpush2.msra.mxu0 0.0
        %550 = vmatprep.subr.mxu0 0.0
        %551 = vmatpush2.msra.mxu0 0.0
        %552 = vmatprep.subr.mxu0 0.0
        %553 = vmatpush2.msra.mxu0 0.0
        %554 = vmatprep.subr.mxu0 0.0
        %555 = vmatpush2.msra.mxu0 0.0
        %556 = vmatprep.subr.mxu0 0.0
        %557 = vmatpush2.msra.mxu0 0.0
        %558 = vmatprep.subr.mxu0 0.0
        %559 = vmatpush2.msra.mxu0 0.0
        %560 = vmatprep.subr.mxu0 0.0
        %561 = vmatpush2.msra.mxu0 0.0
        %562 = vmatprep.subr.mxu0 0.0
        %563 = vmatpush2.msra.mxu0 0.0
        %564 = vmatprep.subr.mxu0 0.0
        %565 = vmatpush2.msra.mxu0 0.0
        %566 = vmatprep.subr.mxu0 0.0
        %567 = vmatpush2.msra.mxu0 0.0
        %568 = vmatprep.subr.mxu0 0.0
        %569 = vmatpush2.msra.mxu0 0.0
        %570 = vmatprep.subr.mxu0 0.0
        %571 = vmatpush2.msra.mxu0 0.0
        %572 = vmatprep.subr.mxu0 0.0
        %573 = vmatpush2.msra.mxu0 0.0
        %574 = vmatprep.subr.mxu0 0.0
        %575 = vmatpush2.msra.mxu0 0.0
        %576 = vmatprep.mubr.f32.mxu0 0.0
        %577 = vmatmul.mubr.f32.gmra.mxu0 %v510
        %v578 = vpop.f32.mrf.mxu0
        %v579 = vadd.f32 0.0, %v578
        %v580 = vpop.f32.mrf.mxu0
        %581 = vdwg.mxu0
        %v582 = vld [vmem:[#allocation11] sm:$0xff]
        %v583 = vld [vmem:[#allocation11 + $0x8] sm:$0xff]
        %v584 = vld [vmem:[#allocation11 + $0x10] sm:$0xff]
        %v585 = vld [vmem:[#allocation11 + $0x18] sm:$0xff]
        %v587 = vsel %vm430, %v425, 0
        %589 = vmatprep.subr.mxu0 0.0
        %590 = vmatpush1.msra.mxu0 0.0
        %591 = vmatprep.subr.mxu0 0.0
        %592 = vmatpush1.msra.mxu0 0.0
        %593 = vmatprep.subr.mxu0 0.0
        %594 = vmatpush1.msra.mxu0 0.0
        %595 = vmatprep.subr.mxu0 0.0
        %596 = vmatpush1.msra.mxu0 0.0
        %597 = vmatprep.subr.mxu0 0.0
        %598 = vmatpush1.msra.mxu0 0.0
        %599 = vmatprep.subr.mxu0 0.0
        %600 = vmatpush1.msra.mxu0 0.0
        %601 = vmatprep.subr.mxu0 0.0
        %602 = vmatpush1.msra.mxu0 0.0
        %603 = vmatprep.subr.mxu0 0.0
        %604 = vmatpush1.msra.mxu0 0.0
        %605 = vmatprep.subr.mxu0 0.0
        %606 = vmatpush1.msra.mxu0 0.0
        %607 = vmatprep.subr.mxu0 0.0
        %608 = vmatpush1.msra.mxu0 0.0
        %609 = vmatprep.subr.mxu0 0.0
        %610 = vmatpush1.msra.mxu0 0.0
        %611 = vmatprep.subr.mxu0 0.0
        %612 = vmatpush1.msra.mxu0 0.0
        %613 = vmatprep.subr.mxu0 0.0
        %614 = vmatpush1.msra.mxu0 %v585
        %615 = vmatprep.subr.mxu0 0.0
        %616 = vmatpush1.msra.mxu0 %v584
        %617 = vmatprep.subr.mxu0 0.0
        %618 = vmatpush1.msra.mxu0 %v583
        %619 = vmatprep.subr.mxu0 0.0
        %620 = vmatpush1.msra.mxu0 %v582
        %621 = vmatprep.subr.mxu0 0.0
        %622 = vmatpush2.msra.mxu0 0.0
        %623 = vmatprep.subr.mxu0 0.0
        %624 = vmatpush2.msra.mxu0 0.0
        %625 = vmatprep.subr.mxu0 0.0
        %626 = vmatpush2.msra.mxu0 0.0
        %627 = vmatprep.subr.mxu0 0.0
        %628 = vmatpush2.msra.mxu0 0.0
        %629 = vmatprep.subr.mxu0 0.0
        %630 = vmatpush2.msra.mxu0 0.0
        %631 = vmatprep.subr.mxu0 0.0
        %632 = vmatpush2.msra.mxu0 0.0
        %633 = vmatprep.subr.mxu0 0.0
        %634 = vmatpush2.msra.mxu0 0.0
        %635 = vmatprep.subr.mxu0 0.0
        %636 = vmatpush2.msra.mxu0 0.0
        %637 = vmatprep.subr.mxu0 0.0
        %638 = vmatpush2.msra.mxu0 0.0
        %639 = vmatprep.subr.mxu0 0.0
        %640 = vmatpush2.msra.mxu0 0.0
        %641 = vmatprep.subr.mxu0 0.0
        %642 = vmatpush2.msra.mxu0 0.0
        %643 = vmatprep.subr.mxu0 0.0
        %644 = vmatpush2.msra.mxu0 0.0
        %645 = vmatprep.subr.mxu0 0.0
        %646 = vmatpush2.msra.mxu0 0.0
        %647 = vmatprep.subr.mxu0 0.0
        %648 = vmatpush2.msra.mxu0 0.0
        %649 = vmatprep.subr.mxu0 0.0
        %650 = vmatpush2.msra.mxu0 0.0
        %651 = vmatprep.subr.mxu0 0.0
        %652 = vmatpush2.msra.mxu0 0.0
        %653 = vmatprep.mubr.f32.mxu0 0.0
        %654 = vmatmul.mubr.f32.gmra.mxu0 %v587
        %v655 = vpop.f32.mrf.mxu0
        %v656 = vadd.f32 0.0, %v655
        %v657 = vpop.f32.mrf.mxu0
        %658 = vdwg.mxu0
        %660 = vrot.lane.b32.xlu0 %v504, 120
        %v661 = vpop.permute.xlu0 %660
        %662 = vrot.lane.b32.xlu0 %v504, 112
        %v663 = vpop.permute.xlu0 %662
        %664 = vrot.lane.b32.xlu0 %v504, 104
        %v665 = vpop.permute.xlu0 %664
        %667 = vrot.lane.b32.xlu0 %v579, 120
        %v668 = vpop.permute.xlu0 %667
        %669 = vrot.lane.b32.xlu0 %v579, 112
        %v670 = vpop.permute.xlu0 %669
        %671 = vrot.lane.b32.xlu0 %v579, 104
        %v672 = vpop.permute.xlu0 %671
        %674 = vrot.lane.b32.xlu0 %v656, 120
        %v675 = vpop.permute.xlu0 %674
        %677 = vrot.lane.b32.xlu0 %v656, 112
        %v678 = vpop.permute.xlu0 %677
        %680 = vrot.lane.b32.xlu0 %v656, 104
        %v681 = vpop.permute.xlu0 %680
        %vm683 = vcmask 64512
        %v684 = vsel %vm683, %v504, 0
        %v686 = vsel %vm683, %v579, 0
        %688 = vmatprep.subr.mxu0 0.0
        %689 = vmatpush1.xpose.msra.mxu0 0.0
        %690 = vmatprep.subr.mxu0 0.0
        %691 = vmatpush1.xpose.msra.mxu0 0.0
        %692 = vmatprep.subr.mxu0 0.0
        %693 = vmatpush1.xpose.msra.mxu0 0.0
        %694 = vmatprep.subr.mxu0 0.0
        %695 = vmatpush1.xpose.msra.mxu0 0.0
        %696 = vmatprep.subr.mxu0 0.0
        %697 = vmatpush1.xpose.msra.mxu0 0.0
        %698 = vmatprep.subr.mxu0 0.0
        %699 = vmatpush1.xpose.msra.mxu0 0.0
        %700 = vmatprep.subr.mxu0 0.0
        %701 = vmatpush1.xpose.msra.mxu0 0.0
        %702 = vmatprep.subr.mxu0 0.0
        %703 = vmatpush1.xpose.msra.mxu0 0.0
        %704 = vmatprep.subr.mxu0 0.0
        %705 = vmatpush1.xpose.msra.mxu0 0.0
        %706 = vmatprep.subr.mxu0 0.0
        %707 = vmatpush1.xpose.msra.mxu0 0.0
        %708 = vmatprep.subr.mxu0 0.0
        %709 = vmatpush1.xpose.msra.mxu0 0.0
        %710 = vmatprep.subr.mxu0 0.0
        %711 = vmatpush1.xpose.msra.mxu0 0.0
        %712 = vmatprep.subr.mxu0 0.0
        %713 = vmatpush1.xpose.msra.mxu0 0.0
        %714 = vmatprep.subr.mxu0 0.0
        %715 = vmatpush1.xpose.msra.mxu0 0.0
        %716 = vmatprep.subr.mxu0 0.0
        %717 = vmatpush1.xpose.msra.mxu0 0.0
        %718 = vmatprep.subr.mxu0 0.0
        %719 = vmatpush1.xpose.msra.mxu0 %v686
        %720 = vmatprep.subr.mxu0 0.0
        %721 = vmatpush2.xpose.msra.mxu0 0.0
        %722 = vmatprep.subr.mxu0 0.0
        %723 = vmatpush2.xpose.msra.mxu0 0.0
        %724 = vmatprep.subr.mxu0 0.0
        %725 = vmatpush2.xpose.msra.mxu0 0.0
        %726 = vmatprep.subr.mxu0 0.0
        %727 = vmatpush2.xpose.msra.mxu0 0.0
        %728 = vmatprep.subr.mxu0 0.0
        %729 = vmatpush2.xpose.msra.mxu0 0.0
        %730 = vmatprep.subr.mxu0 0.0
        %731 = vmatpush2.xpose.msra.mxu0 0.0
        %732 = vmatprep.subr.mxu0 0.0
        %733 = vmatpush2.xpose.msra.mxu0 0.0
        %734 = vmatprep.subr.mxu0 0.0
        %735 = vmatpush2.xpose.msra.mxu0 0.0
        %736 = vmatprep.subr.mxu0 0.0
        %737 = vmatpush2.xpose.msra.mxu0 0.0
        %738 = vmatprep.subr.mxu0 0.0
        %739 = vmatpush2.xpose.msra.mxu0 0.0
        %740 = vmatprep.subr.mxu0 0.0
        %741 = vmatpush2.xpose.msra.mxu0 0.0
        %742 = vmatprep.subr.mxu0 0.0
        %743 = vmatpush2.xpose.msra.mxu0 0.0
        %744 = vmatprep.subr.mxu0 0.0
        %745 = vmatpush2.xpose.msra.mxu0 0.0
        %746 = vmatprep.subr.mxu0 0.0
        %747 = vmatpush2.xpose.msra.mxu0 0.0
        %748 = vmatprep.subr.mxu0 0.0
        %749 = vmatpush2.xpose.msra.mxu0 0.0
        %750 = vmatprep.subr.mxu0 0.0
        %751 = vmatpush2.xpose.msra.mxu0 0.0
        %752 = vmatprep.mubr.f32.mxu0 0.0
        %753 = vmatmul.mubr.f32.gmra.mxu0 %v684
        %v754 = vpop.f32.mrf.mxu0
        %v755 = vadd.f32 0.0, %v754
        %v756 = vpop.f32.mrf.mxu0
        %757 = vdwg.mxu0
        %v758 = vsel %vm683, %v661, 0
        %v760 = vsel %vm683, %v668, 0
        %762 = vmatprep.subr.mxu0 0.0
        %763 = vmatpush1.xpose.msra.mxu0 0.0
        %764 = vmatprep.subr.mxu0 0.0
        %765 = vmatpush1.xpose.msra.mxu0 0.0
        %766 = vmatprep.subr.mxu0 0.0
        %767 = vmatpush1.xpose.msra.mxu0 0.0
        %768 = vmatprep.subr.mxu0 0.0
        %769 = vmatpush1.xpose.msra.mxu0 0.0
        %770 = vmatprep.subr.mxu0 0.0
        %771 = vmatpush1.xpose.msra.mxu0 0.0
        %772 = vmatprep.subr.mxu0 0.0
        %773 = vmatpush1.xpose.msra.mxu0 0.0
        %774 = vmatprep.subr.mxu0 0.0
        %775 = vmatpush1.xpose.msra.mxu0 0.0
        %776 = vmatprep.subr.mxu0 0.0
        %777 = vmatpush1.xpose.msra.mxu0 0.0
        %778 = vmatprep.subr.mxu0 0.0
        %779 = vmatpush1.xpose.msra.mxu0 0.0
        %780 = vmatprep.subr.mxu0 0.0
        %781 = vmatpush1.xpose.msra.mxu0 0.0
        %782 = vmatprep.subr.mxu0 0.0
        %783 = vmatpush1.xpose.msra.mxu0 0.0
        %784 = vmatprep.subr.mxu0 0.0
        %785 = vmatpush1.xpose.msra.mxu0 0.0
        %786 = vmatprep.subr.mxu0 0.0
        %787 = vmatpush1.xpose.msra.mxu0 0.0
        %788 = vmatprep.subr.mxu0 0.0
        %789 = vmatpush1.xpose.msra.mxu0 0.0
        %790 = vmatprep.subr.mxu0 0.0
        %791 = vmatpush1.xpose.msra.mxu0 0.0
        %792 = vmatprep.subr.mxu0 0.0
        %793 = vmatpush1.xpose.msra.mxu0 %v760
        %794 = vmatprep.subr.mxu0 0.0
        %795 = vmatpush2.xpose.msra.mxu0 0.0
        %796 = vmatprep.subr.mxu0 0.0
        %797 = vmatpush2.xpose.msra.mxu0 0.0
        %798 = vmatprep.subr.mxu0 0.0
        %799 = vmatpush2.xpose.msra.mxu0 0.0
        %800 = vmatprep.subr.mxu0 0.0
        %801 = vmatpush2.xpose.msra.mxu0 0.0
        %802 = vmatprep.subr.mxu0 0.0
        %803 = vmatpush2.xpose.msra.mxu0 0.0
        %804 = vmatprep.subr.mxu0 0.0
        %805 = vmatpush2.xpose.msra.mxu0 0.0
        %806 = vmatprep.subr.mxu0 0.0
        %807 = vmatpush2.xpose.msra.mxu0 0.0
        %808 = vmatprep.subr.mxu0 0.0
        %809 = vmatpush2.xpose.msra.mxu0 0.0
        %810 = vmatprep.subr.mxu0 0.0
        %811 = vmatpush2.xpose.msra.mxu0 0.0
        %812 = vmatprep.subr.mxu0 0.0
        %813 = vmatpush2.xpose.msra.mxu0 0.0
        %814 = vmatprep.subr.mxu0 0.0
        %815 = vmatpush2.xpose.msra.mxu0 0.0
        %816 = vmatprep.subr.mxu0 0.0
        %817 = vmatpush2.xpose.msra.mxu0 0.0
        %818 = vmatprep.subr.mxu0 0.0
        %819 = vmatpush2.xpose.msra.mxu0 0.0
        %820 = vmatprep.subr.mxu0 0.0
        %821 = vmatpush2.xpose.msra.mxu0 0.0
        %822 = vmatprep.subr.mxu0 0.0
        %823 = vmatpush2.xpose.msra.mxu0 0.0
        %824 = vmatprep.subr.mxu0 0.0
        %825 = vmatpush2.xpose.msra.mxu0 0.0
        %826 = vmatprep.mubr.f32.mxu0 0.0
        %827 = vmatmul.mubr.f32.gmra.mxu0 %v758
        %v828 = vpop.f32.mrf.mxu0
        %v829 = vadd.f32 0.0, %v828
        %v830 = vpop.f32.mrf.mxu0
        %831 = vdwg.mxu0
        %v832 = vsel %vm683, %v663, 0
        %v834 = vsel %vm683, %v670, 0
        %836 = vmatprep.subr.mxu0 0.0
        %837 = vmatpush1.xpose.msra.mxu0 0.0
        %838 = vmatprep.subr.mxu0 0.0
        %839 = vmatpush1.xpose.msra.mxu0 0.0
        %840 = vmatprep.subr.mxu0 0.0
        %841 = vmatpush1.xpose.msra.mxu0 0.0
        %842 = vmatprep.subr.mxu0 0.0
        %843 = vmatpush1.xpose.msra.mxu0 0.0
        %844 = vmatprep.subr.mxu0 0.0
        %845 = vmatpush1.xpose.msra.mxu0 0.0
        %846 = vmatprep.subr.mxu0 0.0
        %847 = vmatpush1.xpose.msra.mxu0 0.0
        %848 = vmatprep.subr.mxu0 0.0
        %849 = vmatpush1.xpose.msra.mxu0 0.0
        %850 = vmatprep.subr.mxu0 0.0
        %851 = vmatpush1.xpose.msra.mxu0 0.0
        %852 = vmatprep.subr.mxu0 0.0
        %853 = vmatpush1.xpose.msra.mxu0 0.0
        %854 = vmatprep.subr.mxu0 0.0
        %855 = vmatpush1.xpose.msra.mxu0 0.0
        %856 = vmatprep.subr.mxu0 0.0
        %857 = vmatpush1.xpose.msra.mxu0 0.0
        %858 = vmatprep.subr.mxu0 0.0
        %859 = vmatpush1.xpose.msra.mxu0 0.0
        %860 = vmatprep.subr.mxu0 0.0
        %861 = vmatpush1.xpose.msra.mxu0 0.0
        %862 = vmatprep.subr.mxu0 0.0
        %863 = vmatpush1.xpose.msra.mxu0 0.0
        %864 = vmatprep.subr.mxu0 0.0
        %865 = vmatpush1.xpose.msra.mxu0 0.0
        %866 = vmatprep.subr.mxu0 0.0
        %867 = vmatpush1.xpose.msra.mxu0 %v834
        %868 = vmatprep.subr.mxu0 0.0
        %869 = vmatpush2.xpose.msra.mxu0 0.0
        %870 = vmatprep.subr.mxu0 0.0
        %871 = vmatpush2.xpose.msra.mxu0 0.0
        %872 = vmatprep.subr.mxu0 0.0
        %873 = vmatpush2.xpose.msra.mxu0 0.0
        %874 = vmatprep.subr.mxu0 0.0
        %875 = vmatpush2.xpose.msra.mxu0 0.0
        %876 = vmatprep.subr.mxu0 0.0
        %877 = vmatpush2.xpose.msra.mxu0 0.0
        %878 = vmatprep.subr.mxu0 0.0
        %879 = vmatpush2.xpose.msra.mxu0 0.0
        %880 = vmatprep.subr.mxu0 0.0
        %881 = vmatpush2.xpose.msra.mxu0 0.0
        %882 = vmatprep.subr.mxu0 0.0
        %883 = vmatpush2.xpose.msra.mxu0 0.0
        %884 = vmatprep.subr.mxu0 0.0
        %885 = vmatpush2.xpose.msra.mxu0 0.0
        %886 = vmatprep.subr.mxu0 0.0
        %887 = vmatpush2.xpose.msra.mxu0 0.0
        %888 = vmatprep.subr.mxu0 0.0
        %889 = vmatpush2.xpose.msra.mxu0 0.0
        %890 = vmatprep.subr.mxu0 0.0
        %891 = vmatpush2.xpose.msra.mxu0 0.0
        %892 = vmatprep.subr.mxu0 0.0
        %893 = vmatpush2.xpose.msra.mxu0 0.0
        %894 = vmatprep.subr.mxu0 0.0
        %895 = vmatpush2.xpose.msra.mxu0 0.0
        %896 = vmatprep.subr.mxu0 0.0
        %897 = vmatpush2.xpose.msra.mxu0 0.0
        %898 = vmatprep.subr.mxu0 0.0
        %899 = vmatpush2.xpose.msra.mxu0 0.0
        %900 = vmatprep.mubr.f32.mxu0 0.0
        %901 = vmatmul.mubr.f32.gmra.mxu0 %v832
        %v902 = vpop.f32.mrf.mxu0
        %v903 = vadd.f32 0.0, %v902
        %v904 = vpop.f32.mrf.mxu0
        %905 = vdwg.mxu0
        %v906 = vsel %vm683, %v665, 0
        %v908 = vsel %vm683, %v672, 0
        %910 = vmatprep.subr.mxu0 0.0
        %911 = vmatpush1.xpose.msra.mxu0 0.0
        %912 = vmatprep.subr.mxu0 0.0
        %913 = vmatpush1.xpose.msra.mxu0 0.0
        %914 = vmatprep.subr.mxu0 0.0
        %915 = vmatpush1.xpose.msra.mxu0 0.0
        %916 = vmatprep.subr.mxu0 0.0
        %917 = vmatpush1.xpose.msra.mxu0 0.0
        %918 = vmatprep.subr.mxu0 0.0
        %919 = vmatpush1.xpose.msra.mxu0 0.0
        %920 = vmatprep.subr.mxu0 0.0
        %921 = vmatpush1.xpose.msra.mxu0 0.0
        %922 = vmatprep.subr.mxu0 0.0
        %923 = vmatpush1.xpose.msra.mxu0 0.0
        %924 = vmatprep.subr.mxu0 0.0
        %925 = vmatpush1.xpose.msra.mxu0 0.0
        %926 = vmatprep.subr.mxu0 0.0
        %927 = vmatpush1.xpose.msra.mxu0 0.0
        %928 = vmatprep.subr.mxu0 0.0
        %929 = vmatpush1.xpose.msra.mxu0 0.0
        %930 = vmatprep.subr.mxu0 0.0
        %931 = vmatpush1.xpose.msra.mxu0 0.0
        %932 = vmatprep.subr.mxu0 0.0
        %933 = vmatpush1.xpose.msra.mxu0 0.0
        %934 = vmatprep.subr.mxu0 0.0
        %935 = vmatpush1.xpose.msra.mxu0 0.0
        %936 = vmatprep.subr.mxu0 0.0
        %937 = vmatpush1.xpose.msra.mxu0 0.0
        %938 = vmatprep.subr.mxu0 0.0
        %939 = vmatpush1.xpose.msra.mxu0 0.0
        %940 = vmatprep.subr.mxu0 0.0
        %941 = vmatpush1.xpose.msra.mxu0 %v908
        %942 = vmatprep.subr.mxu0 0.0
        %943 = vmatpush2.xpose.msra.mxu0 0.0
        %944 = vmatprep.subr.mxu0 0.0
        %945 = vmatpush2.xpose.msra.mxu0 0.0
        %946 = vmatprep.subr.mxu0 0.0
        %947 = vmatpush2.xpose.msra.mxu0 0.0
        %948 = vmatprep.subr.mxu0 0.0
        %949 = vmatpush2.xpose.msra.mxu0 0.0
        %950 = vmatprep.subr.mxu0 0.0
        %951 = vmatpush2.xpose.msra.mxu0 0.0
        %952 = vmatprep.subr.mxu0 0.0
        %953 = vmatpush2.xpose.msra.mxu0 0.0
        %954 = vmatprep.subr.mxu0 0.0
        %955 = vmatpush2.xpose.msra.mxu0 0.0
        %956 = vmatprep.subr.mxu0 0.0
        %957 = vmatpush2.xpose.msra.mxu0 0.0
        %958 = vmatprep.subr.mxu0 0.0
        %959 = vmatpush2.xpose.msra.mxu0 0.0
        %960 = vmatprep.subr.mxu0 0.0
        %961 = vmatpush2.xpose.msra.mxu0 0.0
        %962 = vmatprep.subr.mxu0 0.0
        %963 = vmatpush2.xpose.msra.mxu0 0.0
        %964 = vmatprep.subr.mxu0 0.0
        %965 = vmatpush2.xpose.msra.mxu0 0.0
        %966 = vmatprep.subr.mxu0 0.0
        %967 = vmatpush2.xpose.msra.mxu0 0.0
        %968 = vmatprep.subr.mxu0 0.0
        %969 = vmatpush2.xpose.msra.mxu0 0.0
        %970 = vmatprep.subr.mxu0 0.0
        %971 = vmatpush2.xpose.msra.mxu0 0.0
        %972 = vmatprep.subr.mxu0 0.0
        %973 = vmatpush2.xpose.msra.mxu0 0.0
        %974 = vmatprep.mubr.f32.mxu0 0.0
        %975 = vmatmul.mubr.f32.gmra.mxu0 %v906
        %v976 = vpop.f32.mrf.mxu0
        %v977 = vadd.f32 0.0, %v976
        %v978 = vpop.f32.mrf.mxu0
        %979 = vdwg.mxu0
        %v980 = vsel %vm683, %v755, -inf
        %981 = vmax.xlane.f32.xlu0 %v980
        %v982 = vpop.xlane.xlu0 %981
        %v983 = vsel %vm683, %v829, -inf
        %984 = vmax.xlane.f32.xlu0 %v983
        %v985 = vpop.xlane.xlu0 %984
        %v986 = vsel %vm683, %v903, -inf
        %987 = vmax.xlane.f32.xlu0 %v986
        %v988 = vpop.xlane.xlu0 %987
        %v989 = vsel %vm683, %v977, -inf
        %990 = vmax.xlane.f32.xlu0 %v989
        %v991 = vpop.xlane.xlu0 %990
        %v992 = vsub.f32 %v755, %v982
        %v993 = vsub.f32 %v829, %v985
        %v994 = vsub.f32 %v903, %v988
        %v995 = vsub.f32 %v977, %v991
        %v996 = vmul.f32 %v992, 1.442695
        %v997 = vpow.pop %v996
        %v998 = vmul.f32 %v993, 1.442695
        %v999 = vpow.pop %v998
        %v1000 = vmul.f32 %v994, 1.442695
        %v1001 = vpow.pop %v1000
        %v1002 = vmul.f32 %v995, 1.442695
        %v1003 = vpow.pop %v1002
        %v1004 = vsel %vm683, %v997, 0.0
        %1005 = vadd.xlane.f32.xlu0 %v1004
        %v1006 = vpop.xlane.xlu0 %1005
        %v1007 = vsel %vm683, %v999, 0.0
        %1008 = vadd.xlane.f32.xlu0 %v1007
        %v1009 = vpop.xlane.xlu0 %1008
        %v1010 = vsel %vm683, %v1001, 0.0
        %1011 = vadd.xlane.f32.xlu0 %v1010
        %v1012 = vpop.xlane.xlu0 %1011
        %v1013 = vsel %vm683, %v1003, 0.0
        %1014 = vadd.xlane.f32.xlu0 %v1013
        %v1015 = vpop.xlane.xlu0 %1014
        %v1016 = vrcp.pop %v1006
        %v1017 = vmul.f32 1.0, %v1016
        %v1018 = vrcp.pop %v1009
        %v1019 = vmul.f32 1.0, %v1018
        %v1020 = vrcp.pop %v1012
        %v1021 = vmul.f32 1.0, %v1020
        %v1022 = vrcp.pop %v1015
        %v1023 = vmul.f32 1.0, %v1022
        %v1024 = vmul.f32 %v997, %v1017
        %v1025 = vmul.f32 %v999, %v1019
        %v1026 = vmul.f32 %v1001, %v1021
        %v1027 = vmul.f32 %v1003, %v1023
        %v1029 = vsel %vm683, %v1024, 0
        %1031 = vmatprep.subr.mxu0 0.0
        %1032 = vmatpush1.msra.mxu0 0.0
        %1033 = vmatprep.subr.mxu0 0.0
        %1034 = vmatpush1.msra.mxu0 0.0
        %1035 = vmatprep.subr.mxu0 0.0
        %1036 = vmatpush1.msra.mxu0 0.0
        %1037 = vmatprep.subr.mxu0 0.0
        %1038 = vmatpush1.msra.mxu0 0.0
        %1039 = vmatprep.subr.mxu0 0.0
        %1040 = vmatpush1.msra.mxu0 0.0
        %1041 = vmatprep.subr.mxu0 0.0
        %1042 = vmatpush1.msra.mxu0 0.0
        %1043 = vmatprep.subr.mxu0 0.0
        %1044 = vmatpush1.msra.mxu0 0.0
        %1045 = vmatprep.subr.mxu0 0.0
        %1046 = vmatpush1.msra.mxu0 0.0
        %1047 = vmatprep.subr.mxu0 0.0
        %1048 = vmatpush1.msra.mxu0 0.0
        %1049 = vmatprep.subr.mxu0 0.0
        %1050 = vmatpush1.msra.mxu0 0.0
        %1051 = vmatprep.subr.mxu0 0.0
        %1052 = vmatpush1.msra.mxu0 0.0
        %1053 = vmatprep.subr.mxu0 0.0
        %1054 = vmatpush1.msra.mxu0 0.0
        %1055 = vmatprep.subr.mxu0 0.0
        %1056 = vmatpush1.msra.mxu0 0.0
        %1057 = vmatprep.subr.mxu0 0.0
        %1058 = vmatpush1.msra.mxu0 0.0
        %1059 = vmatprep.subr.mxu0 0.0
        %1060 = vmatpush1.msra.mxu0 0.0
        %1061 = vmatprep.subr.mxu0 0.0
        %1062 = vmatpush1.msra.mxu0 %v656
        %1063 = vmatprep.subr.mxu0 0.0
        %1064 = vmatpush2.msra.mxu0 0.0
        %1065 = vmatprep.subr.mxu0 0.0
        %1066 = vmatpush2.msra.mxu0 0.0
        %1067 = vmatprep.subr.mxu0 0.0
        %1068 = vmatpush2.msra.mxu0 0.0
        %1069 = vmatprep.subr.mxu0 0.0
        %1070 = vmatpush2.msra.mxu0 0.0
        %1071 = vmatprep.subr.mxu0 0.0
        %1072 = vmatpush2.msra.mxu0 0.0
        %1073 = vmatprep.subr.mxu0 0.0
        %1074 = vmatpush2.msra.mxu0 0.0
        %1075 = vmatprep.subr.mxu0 0.0
        %1076 = vmatpush2.msra.mxu0 0.0
        %1077 = vmatprep.subr.mxu0 0.0
        %1078 = vmatpush2.msra.mxu0 0.0
        %1079 = vmatprep.subr.mxu0 0.0
        %1080 = vmatpush2.msra.mxu0 0.0
        %1081 = vmatprep.subr.mxu0 0.0
        %1082 = vmatpush2.msra.mxu0 0.0
        %1083 = vmatprep.subr.mxu0 0.0
        %1084 = vmatpush2.msra.mxu0 0.0
        %1085 = vmatprep.subr.mxu0 0.0
        %1086 = vmatpush2.msra.mxu0 0.0
        %1087 = vmatprep.subr.mxu0 0.0
        %1088 = vmatpush2.msra.mxu0 0.0
        %1089 = vmatprep.subr.mxu0 0.0
        %1090 = vmatpush2.msra.mxu0 0.0
        %1091 = vmatprep.subr.mxu0 0.0
        %1092 = vmatpush2.msra.mxu0 0.0
        %1093 = vmatprep.subr.mxu0 0.0
        %1094 = vmatpush2.msra.mxu0 0.0
        %1095 = vmatprep.mubr.f32.mxu0 0.0
        %1096 = vmatmul.mubr.f32.gmra.mxu0 %v1029
        %v1097 = vpop.f32.mrf.mxu0
        %v1098 = vadd.f32 0.0, %v1097
        %v1099 = vpop.f32.mrf.mxu0
        %1100 = vdwg.mxu0
        %v1102 = vsel %vm683, %v1025, 0
        %1104 = vmatprep.subr.mxu0 0.0
        %1105 = vmatpush1.msra.mxu0 0.0
        %1106 = vmatprep.subr.mxu0 0.0
        %1107 = vmatpush1.msra.mxu0 0.0
        %1108 = vmatprep.subr.mxu0 0.0
        %1109 = vmatpush1.msra.mxu0 0.0
        %1110 = vmatprep.subr.mxu0 0.0
        %1111 = vmatpush1.msra.mxu0 0.0
        %1112 = vmatprep.subr.mxu0 0.0
        %1113 = vmatpush1.msra.mxu0 0.0
        %1114 = vmatprep.subr.mxu0 0.0
        %1115 = vmatpush1.msra.mxu0 0.0
        %1116 = vmatprep.subr.mxu0 0.0
        %1117 = vmatpush1.msra.mxu0 0.0
        %1118 = vmatprep.subr.mxu0 0.0
        %1119 = vmatpush1.msra.mxu0 0.0
        %1120 = vmatprep.subr.mxu0 0.0
        %1121 = vmatpush1.msra.mxu0 0.0
        %1122 = vmatprep.subr.mxu0 0.0
        %1123 = vmatpush1.msra.mxu0 0.0
        %1124 = vmatprep.subr.mxu0 0.0
        %1125 = vmatpush1.msra.mxu0 0.0
        %1126 = vmatprep.subr.mxu0 0.0
        %1127 = vmatpush1.msra.mxu0 0.0
        %1128 = vmatprep.subr.mxu0 0.0
        %1129 = vmatpush1.msra.mxu0 0.0
        %1130 = vmatprep.subr.mxu0 0.0
        %1131 = vmatpush1.msra.mxu0 0.0
        %1132 = vmatprep.subr.mxu0 0.0
        %1133 = vmatpush1.msra.mxu0 0.0
        %1134 = vmatprep.subr.mxu0 0.0
        %1135 = vmatpush1.msra.mxu0 %v675
        %1136 = vmatprep.subr.mxu0 0.0
        %1137 = vmatpush2.msra.mxu0 0.0
        %1138 = vmatprep.subr.mxu0 0.0
        %1139 = vmatpush2.msra.mxu0 0.0
        %1140 = vmatprep.subr.mxu0 0.0
        %1141 = vmatpush2.msra.mxu0 0.0
        %1142 = vmatprep.subr.mxu0 0.0
        %1143 = vmatpush2.msra.mxu0 0.0
        %1144 = vmatprep.subr.mxu0 0.0
        %1145 = vmatpush2.msra.mxu0 0.0
        %1146 = vmatprep.subr.mxu0 0.0
        %1147 = vmatpush2.msra.mxu0 0.0
        %1148 = vmatprep.subr.mxu0 0.0
        %1149 = vmatpush2.msra.mxu0 0.0
        %1150 = vmatprep.subr.mxu0 0.0
        %1151 = vmatpush2.msra.mxu0 0.0
        %1152 = vmatprep.subr.mxu0 0.0
        %1153 = vmatpush2.msra.mxu0 0.0
        %1154 = vmatprep.subr.mxu0 0.0
        %1155 = vmatpush2.msra.mxu0 0.0
        %1156 = vmatprep.subr.mxu0 0.0
        %1157 = vmatpush2.msra.mxu0 0.0
        %1158 = vmatprep.subr.mxu0 0.0
        %1159 = vmatpush2.msra.mxu0 0.0
        %1160 = vmatprep.subr.mxu0 0.0
        %1161 = vmatpush2.msra.mxu0 0.0
        %1162 = vmatprep.subr.mxu0 0.0
        %1163 = vmatpush2.msra.mxu0 0.0
        %1164 = vmatprep.subr.mxu0 0.0
        %1165 = vmatpush2.msra.mxu0 0.0
        %1166 = vmatprep.subr.mxu0 0.0
        %1167 = vmatpush2.msra.mxu0 0.0
        %1168 = vmatprep.mubr.f32.mxu0 0.0
        %1169 = vmatmul.mubr.f32.gmra.mxu0 %v1102
        %v1170 = vpop.f32.mrf.mxu0
        %v1171 = vadd.f32 0.0, %v1170
        %v1172 = vpop.f32.mrf.mxu0
        %1173 = vdwg.mxu0
        %v1175 = vsel %vm683, %v1026, 0
        %1177 = vmatprep.subr.mxu0 0.0
        %1178 = vmatpush1.msra.mxu0 0.0
        %1179 = vmatprep.subr.mxu0 0.0
        %1180 = vmatpush1.msra.mxu0 0.0
        %1181 = vmatprep.subr.mxu0 0.0
        %1182 = vmatpush1.msra.mxu0 0.0
        %1183 = vmatprep.subr.mxu0 0.0
        %1184 = vmatpush1.msra.mxu0 0.0
        %1185 = vmatprep.subr.mxu0 0.0
        %1186 = vmatpush1.msra.mxu0 0.0
        %1187 = vmatprep.subr.mxu0 0.0
        %1188 = vmatpush1.msra.mxu0 0.0
        %1189 = vmatprep.subr.mxu0 0.0
        %1190 = vmatpush1.msra.mxu0 0.0
        %1191 = vmatprep.subr.mxu0 0.0
        %1192 = vmatpush1.msra.mxu0 0.0
        %1193 = vmatprep.subr.mxu0 0.0
        %1194 = vmatpush1.msra.mxu0 0.0
        %1195 = vmatprep.subr.mxu0 0.0
        %1196 = vmatpush1.msra.mxu0 0.0
        %1197 = vmatprep.subr.mxu0 0.0
        %1198 = vmatpush1.msra.mxu0 0.0
        %1199 = vmatprep.subr.mxu0 0.0
        %1200 = vmatpush1.msra.mxu0 0.0
        %1201 = vmatprep.subr.mxu0 0.0
        %1202 = vmatpush1.msra.mxu0 0.0
        %1203 = vmatprep.subr.mxu0 0.0
        %1204 = vmatpush1.msra.mxu0 0.0
        %1205 = vmatprep.subr.mxu0 0.0
        %1206 = vmatpush1.msra.mxu0 0.0
        %1207 = vmatprep.subr.mxu0 0.0
        %1208 = vmatpush1.msra.mxu0 %v678
        %1209 = vmatprep.subr.mxu0 0.0
        %1210 = vmatpush2.msra.mxu0 0.0
        %1211 = vmatprep.subr.mxu0 0.0
        %1212 = vmatpush2.msra.mxu0 0.0
        %1213 = vmatprep.subr.mxu0 0.0
        %1214 = vmatpush2.msra.mxu0 0.0
        %1215 = vmatprep.subr.mxu0 0.0
        %1216 = vmatpush2.msra.mxu0 0.0
        %1217 = vmatprep.subr.mxu0 0.0
        %1218 = vmatpush2.msra.mxu0 0.0
        %1219 = vmatprep.subr.mxu0 0.0
        %1220 = vmatpush2.msra.mxu0 0.0
        %1221 = vmatprep.subr.mxu0 0.0
        %1222 = vmatpush2.msra.mxu0 0.0
        %1223 = vmatprep.subr.mxu0 0.0
        %1224 = vmatpush2.msra.mxu0 0.0
        %1225 = vmatprep.subr.mxu0 0.0
        %1226 = vmatpush2.msra.mxu0 0.0
        %1227 = vmatprep.subr.mxu0 0.0
        %1228 = vmatpush2.msra.mxu0 0.0
        %1229 = vmatprep.subr.mxu0 0.0
        %1230 = vmatpush2.msra.mxu0 0.0
        %1231 = vmatprep.subr.mxu0 0.0
        %1232 = vmatpush2.msra.mxu0 0.0
        %1233 = vmatprep.subr.mxu0 0.0
        %1234 = vmatpush2.msra.mxu0 0.0
        %1235 = vmatprep.subr.mxu0 0.0
        %1236 = vmatpush2.msra.mxu0 0.0
        %1237 = vmatprep.subr.mxu0 0.0
        %1238 = vmatpush2.msra.mxu0 0.0
        %1239 = vmatprep.subr.mxu0 0.0
        %1240 = vmatpush2.msra.mxu0 0.0
        %1241 = vmatprep.mubr.f32.mxu0 0.0
        %1242 = vmatmul.mubr.f32.gmra.mxu0 %v1175
        %v1243 = vpop.f32.mrf.mxu0
        %v1244 = vadd.f32 0.0, %v1243
        %v1245 = vpop.f32.mrf.mxu0
        %1246 = vdwg.mxu0
        %v1248 = vsel %vm683, %v1027, 0
        %1250 = vmatprep.subr.mxu0 0.0
        %1251 = vmatpush1.msra.mxu0 0.0
        %1252 = vmatprep.subr.mxu0 0.0
        %1253 = vmatpush1.msra.mxu0 0.0
        %1254 = vmatprep.subr.mxu0 0.0
        %1255 = vmatpush1.msra.mxu0 0.0
        %1256 = vmatprep.subr.mxu0 0.0
        %1257 = vmatpush1.msra.mxu0 0.0
        %1258 = vmatprep.subr.mxu0 0.0
        %1259 = vmatpush1.msra.mxu0 0.0
        %1260 = vmatprep.subr.mxu0 0.0
        %1261 = vmatpush1.msra.mxu0 0.0
        %1262 = vmatprep.subr.mxu0 0.0
        %1263 = vmatpush1.msra.mxu0 0.0
        %1264 = vmatprep.subr.mxu0 0.0
        %1265 = vmatpush1.msra.mxu0 0.0
        %1266 = vmatprep.subr.mxu0 0.0
        %1267 = vmatpush1.msra.mxu0 0.0
        %1268 = vmatprep.subr.mxu0 0.0
        %1269 = vmatpush1.msra.mxu0 0.0
        %1270 = vmatprep.subr.mxu0 0.0
        %1271 = vmatpush1.msra.mxu0 0.0
        %1272 = vmatprep.subr.mxu0 0.0
        %1273 = vmatpush1.msra.mxu0 0.0
        %1274 = vmatprep.subr.mxu0 0.0
        %1275 = vmatpush1.msra.mxu0 0.0
        %1276 = vmatprep.subr.mxu0 0.0
        %1277 = vmatpush1.msra.mxu0 0.0
        %1278 = vmatprep.subr.mxu0 0.0
        %1279 = vmatpush1.msra.mxu0 0.0
        %1280 = vmatprep.subr.mxu0 0.0
        %1281 = vmatpush1.msra.mxu0 %v681
        %1282 = vmatprep.subr.mxu0 0.0
        %1283 = vmatpush2.msra.mxu0 0.0
        %1284 = vmatprep.subr.mxu0 0.0
        %1285 = vmatpush2.msra.mxu0 0.0
        %1286 = vmatprep.subr.mxu0 0.0
        %1287 = vmatpush2.msra.mxu0 0.0
        %1288 = vmatprep.subr.mxu0 0.0
        %1289 = vmatpush2.msra.mxu0 0.0
        %1290 = vmatprep.subr.mxu0 0.0
        %1291 = vmatpush2.msra.mxu0 0.0
        %1292 = vmatprep.subr.mxu0 0.0
        %1293 = vmatpush2.msra.mxu0 0.0
        %1294 = vmatprep.subr.mxu0 0.0
        %1295 = vmatpush2.msra.mxu0 0.0
        %1296 = vmatprep.subr.mxu0 0.0
        %1297 = vmatpush2.msra.mxu0 0.0
        %1298 = vmatprep.subr.mxu0 0.0
        %1299 = vmatpush2.msra.mxu0 0.0
        %1300 = vmatprep.subr.mxu0 0.0
        %1301 = vmatpush2.msra.mxu0 0.0
        %1302 = vmatprep.subr.mxu0 0.0
        %1303 = vmatpush2.msra.mxu0 0.0
        %1304 = vmatprep.subr.mxu0 0.0
        %1305 = vmatpush2.msra.mxu0 0.0
        %1306 = vmatprep.subr.mxu0 0.0
        %1307 = vmatpush2.msra.mxu0 0.0
        %1308 = vmatprep.subr.mxu0 0.0
        %1309 = vmatpush2.msra.mxu0 0.0
        %1310 = vmatprep.subr.mxu0 0.0
        %1311 = vmatpush2.msra.mxu0 0.0
        %1312 = vmatprep.subr.mxu0 0.0
        %1313 = vmatpush2.msra.mxu0 0.0
        %1314 = vmatprep.mubr.f32.mxu0 0.0
        %1315 = vmatmul.mubr.f32.gmra.mxu0 %v1248
        %v1316 = vpop.f32.mrf.mxu0
        %v1317 = vadd.f32 0.0, %v1316
        %v1318 = vpop.f32.mrf.mxu0
        %1319 = vdwg.mxu0
        %1321 = vrot.lane.b32.xlu0 %v1171, 8
        %v1322 = vpop.permute.xlu0 %1321
        %1325 = vrot.lane.b32.xlu0 %v1244, 16
        %v1326 = vpop.permute.xlu0 %1325
        %1329 = vrot.lane.b32.xlu0 %v1317, 24
        %v1330 = vpop.permute.xlu0 %1329
        %v1332 = vsel %vm683, %v1098, %v1322
        %vm1333 = vcmask 130048
        %v1334 = vsel %vm1333, %v1332, %v1326
        %vm1335 = vcmask 195584
        %v1336 = vsel %vm1335, %v1334, %v1330
        %v1337 = vld [vmem:[#allocation13] sm:$0xff]
        %v1338 = vld [vmem:[#allocation13 + $0x8] sm:$0xff]
        %v1339 = vld [vmem:[#allocation13 + $0x10] sm:$0xff]
        %v1340 = vld [vmem:[#allocation13 + $0x18] sm:$0xff]
        %v1342 = vsel %vm430, %v1336, 0
        %1344 = vmatprep.subr.mxu0 0.0
        %1345 = vmatpush1.msra.mxu0 0.0
        %1346 = vmatprep.subr.mxu0 0.0
        %1347 = vmatpush1.msra.mxu0 0.0
        %1348 = vmatprep.subr.mxu0 0.0
        %1349 = vmatpush1.msra.mxu0 0.0
        %1350 = vmatprep.subr.mxu0 0.0
        %1351 = vmatpush1.msra.mxu0 0.0
        %1352 = vmatprep.subr.mxu0 0.0
        %1353 = vmatpush1.msra.mxu0 0.0
        %1354 = vmatprep.subr.mxu0 0.0
        %1355 = vmatpush1.msra.mxu0 0.0
        %1356 = vmatprep.subr.mxu0 0.0
        %1357 = vmatpush1.msra.mxu0 0.0
        %1358 = vmatprep.subr.mxu0 0.0
        %1359 = vmatpush1.msra.mxu0 0.0
        %1360 = vmatprep.subr.mxu0 0.0
        %1361 = vmatpush1.msra.mxu0 0.0
        %1362 = vmatprep.subr.mxu0 0.0
        %1363 = vmatpush1.msra.mxu0 0.0
        %1364 = vmatprep.subr.mxu0 0.0
        %1365 = vmatpush1.msra.mxu0 0.0
        %1366 = vmatprep.subr.mxu0 0.0
        %1367 = vmatpush1.msra.mxu0 0.0
        %1368 = vmatprep.subr.mxu0 0.0
        %1369 = vmatpush1.msra.mxu0 %v1340
        %1370 = vmatprep.subr.mxu0 0.0
        %1371 = vmatpush1.msra.mxu0 %v1339
        %1372 = vmatprep.subr.mxu0 0.0
        %1373 = vmatpush1.msra.mxu0 %v1338
        %1374 = vmatprep.subr.mxu0 0.0
        %1375 = vmatpush1.msra.mxu0 %v1337
        %1376 = vmatprep.subr.mxu0 0.0
        %1377 = vmatpush2.msra.mxu0 0.0
        %1378 = vmatprep.subr.mxu0 0.0
        %1379 = vmatpush2.msra.mxu0 0.0
        %1380 = vmatprep.subr.mxu0 0.0
        %1381 = vmatpush2.msra.mxu0 0.0
        %1382 = vmatprep.subr.mxu0 0.0
        %1383 = vmatpush2.msra.mxu0 0.0
        %1384 = vmatprep.subr.mxu0 0.0
        %1385 = vmatpush2.msra.mxu0 0.0
        %1386 = vmatprep.subr.mxu0 0.0
        %1387 = vmatpush2.msra.mxu0 0.0
        %1388 = vmatprep.subr.mxu0 0.0
        %1389 = vmatpush2.msra.mxu0 0.0
        %1390 = vmatprep.subr.mxu0 0.0
        %1391 = vmatpush2.msra.mxu0 0.0
        %1392 = vmatprep.subr.mxu0 0.0
        %1393 = vmatpush2.msra.mxu0 0.0
        %1394 = vmatprep.subr.mxu0 0.0
        %1395 = vmatpush2.msra.mxu0 0.0
        %1396 = vmatprep.subr.mxu0 0.0
        %1397 = vmatpush2.msra.mxu0 0.0
        %1398 = vmatprep.subr.mxu0 0.0
        %1399 = vmatpush2.msra.mxu0 0.0
        %1400 = vmatprep.subr.mxu0 0.0
        %1401 = vmatpush2.msra.mxu0 0.0
        %1402 = vmatprep.subr.mxu0 0.0
        %1403 = vmatpush2.msra.mxu0 0.0
        %1404 = vmatprep.subr.mxu0 0.0
        %1405 = vmatpush2.msra.mxu0 0.0
        %1406 = vmatprep.subr.mxu0 0.0
        %1407 = vmatpush2.msra.mxu0 0.0
        %1408 = vmatprep.mubr.f32.mxu0 0.0
        %1409 = vmatmul.mubr.f32.gmra.mxu0 %v1342
        %v1410 = vpop.f32.mrf.mxu0
        %v1411 = vadd.f32 0.0, %v1410
        %v1412 = vpop.f32.mrf.mxu0
        %1413 = vdwg.mxu0
        %1414 = vst.msk [vmem:[%s422] sm:$0xff] %vm430, %v1411
        %s1415 = sand.u32 %s199, 1
        %s1416 = scalar_lea.sflag [#allocation4], %s1415
        %s1417 = sand.u32 %s199, 1
        %s1418 = smul.addr %s1417, 8
        %s1419 = scalar_lea.vmem [#allocation14], %s1418
        // Predicated region
        $region77: #{tpu_custom_call.1} parent=47 // pred_check
          %p1420 = pneg %p209
        $region78: #{tpu_custom_call.1} parent=47 // pred_check_branch
          %1422 = sbr.rel (%p1420) target = $region80
        $region79: #{tpu_custom_call.1} parent=47 // pred_region
          %s1424 = ssub.s32 128, 128
          %1425 = vsyncadd %s1416, %s1424
          %s1426 = smul.addr %s29, 128
          %s1427 = scalar_lea.hbm %s7, %s1426
          %s1429 = sshll.u32 %s1419, 4
          %s1430 = int_to_ptr.vmem [resolvable:$true] %s1429
          %1432 = dma.vmem_to_hbm [thread:$0]  %s1430, 128, %s1427, %s1416
        $region80: #{tpu_custom_call.1} parent=47 // pred_fallthru
          _
      $region48: #{tpu_custom_call.1} parent=5 // pred_fallthru
        _
      %p1433 = scmp.le.s32.totalorder 2, %s24
      // Predicated region
      $region81: #{tpu_custom_call.1} parent=5 // pred_check
        %p1434 = pneg %p1433
      $region82: #{tpu_custom_call.1} parent=5 // pred_check_branch
        %1436 = sbr.rel (%p1434) target = $region84
      $region83: #{tpu_custom_call.1} parent=5 // pred_region
        %s1437 = ssub.s32 %s24, 2
        // Predicated region
        $region85: #{tpu_custom_call.1} parent=83 // pred_check
          %p1438 = pneg %p215
        $region86: #{tpu_custom_call.1} parent=83 // pred_check_branch
          %1440 = sbr.rel (%p1438) target = $region88
        $region87: #{tpu_custom_call.1} parent=83 // pred_region
          %s1441 = sand.u32 %s200, 1
          %s1442 = scalar_lea.sflag [#allocation4], %s1441
          %s1443 = sand.u32 %s200, 1
          %s1444 = smul.addr %s1443, 8
          %s1445 = scalar_lea.vmem [#allocation14], %s1444
          %1446 = dma.done %s1442, 128
        $region88: #{tpu_custom_call.1} parent=83 // pred_fallthru
          _
      $region84: #{tpu_custom_call.1} parent=5 // pred_fallthru
        _
    $region6: #{tpu_custom_call.1} parent=1 // loop_footer
      %s28 = sadd.s32 1, %s24
    $region7: #{tpu_custom_call.1} parent=1 // loop_footer_branch
      %23 = sbr.rel target = $region3
    $region8: #{tpu_custom_call.1} parent=1 // loop_exit
      _
    %1447 = vsyncpa [#allocation3], 1
    %s1448 = scalar_lea.sflag [#allocation3], 1
    %1449 = vsyncpa %s1448, 1
    %1450 = vsyncpa [#allocation6], 1
    %s1451 = scalar_lea.sflag [#allocation6], 1
    %1452 = vsyncpa %s1451, 1
    %1453 = vsyncpa [#allocation9], 1
    %1454 = vsyncpa [#allocation12], 1
    %1455 = vsyncpa [#allocation4], 1
    %s1456 = scalar_lea.sflag [#allocation4], 1
    %1457 = vsyncpa %s1456, 1

</llo_original>
